<compile_context>
chip_gen: v7x
topology: tpu7x:2x2x1
jax: 0.10.0
libtpu: 0.0.40
codegen_flags: <defaults>
</compile_context>

<pallas_src>
import jax
import jax.numpy as jnp
from jax.experimental import pallas as pl
from jax.experimental.pallas import tpu as pltpu


# ------------------------------ Pallas kernel -------------------------------


def rnn_agent_fused_kernel(
        x0_ref, h_ref,
        m1_ref, b1_ref, m2_ref, b2_ref,
        fc1w_ref, fc1b_ref,
        wi_ref, bi_ref, wh_ref, bh_ref,
        fc2w_ref, fc2b_ref,
        q_ref, hout_ref):
    # x0_ref : (Bp, F)   NHWC-flattened observation (F = H*W*C), Bp = pad(B,8)
    # h_ref  : (Bp, P)   previous hidden state, P = pad(Hd, 128)
    # m1/m2  : (F, F)    conv1/conv2 lowered to dense linear maps (bf16)
    # wi/wh  : (P, 3P)   fused GRU gate weights [r|z|n]
    # outputs: q (Bp, A_pad), new hidden (Bp, P)   -- both lane-dense
    P = h_ref.shape[-1]

    x0 = x0_ref[...]
    h = h_ref[...]

    def mm(a, b):
        return jnp.dot(a, b, preferred_element_type=jnp.float32)

    def mm_bf16(a_f32, w_ref):
        # bf16 x bf16 -> f32 accumulation on the MXU; halves weight DMA.
        return jnp.dot(a_f32.astype(jnp.bfloat16), w_ref[...],
                       preferred_element_type=jnp.float32)

    def sigmoid(v):
        # tanh form: stays on the EUP (free slot) and is overflow-safe.
        return 0.5 * jnp.tanh(0.5 * v) + 0.5

    # conv1 + ReLU, conv2 + ReLU as lane-dense MXU matmuls (zero padding
    # folded into m1/m2; outputs already in PyTorch's (C,H,W) flatten order).
    y1 = jnp.maximum(mm_bf16(x0, m1_ref) + b1_ref[...], 0.0)
    y2 = jnp.maximum(mm_bf16(y1, m2_ref) + b2_ref[...], 0.0)

    # fc1 + ReLU  (padded output lanes are exactly 0)
    a = jnp.maximum(mm_bf16(y2, fc1w_ref) + fc1b_ref[...], 0.0)

    # GRUCell (PyTorch semantics, gate order r, z, n) with the 6 gate matmuls
    # fused into 2; gate slices land on 128-lane tile boundaries.
    gi = mm(a, wi_ref[...]) + bi_ref[...]
    gh = mm(h, wh_ref[...]) + bh_ref[...]
    r = sigmoid(gi[:, 0 * P:1 * P] + gh[:, 0 * P:1 * P])
    z = sigmoid(gi[:, 1 * P:2 * P] + gh[:, 1 * P:2 * P])
    n = jnp.tanh(gi[:, 2 * P:3 * P] + r * gh[:, 2 * P:3 * P])
    h_new = (1.0 - z) * n + z * h          # padded lanes stay exactly 0

    # fc2 (A padded to 128 -> unmasked lane-dense store; slice in wrapper)
    q_ref[...] = mm(h_new, fc2w_ref[...]) + fc2b_ref[...]
    hout_ref[...] = h_new


# ----------------------- one-time parameter preparation ---------------------


def prepare_params(params, input_shape, lane=128):
    """Convert PyTorch-layout parameters to the layouts the fused kernel
    consumes.  Runs ONCE (off the per-step hot path)."""
    H, W, C = input_shape
    F = C * H * W
    Hd = params["fc1_w"].shape[0]
    A = params["fc2_w"].shape[0]
    P = ((Hd + lane - 1) // lane) * lane        # padded hidden width
    A_pad = ((A + lane - 1) // lane) * lane     # padded action width

    def pad_to(x, shape):
        return jnp.pad(x, [(0, t - s) for s, t in zip(x.shape, shape)])

    def conv_as_matrix(w_oihw, input_is_nhwc_flat):
        # Lower a 3x3 stride-1 "same" conv (no bias) to the equivalent dense
        # linear map on a flattened image.  Rows follow the chosen *input*
        # flatten order, columns follow PyTorch's (C,H,W) flatten order.
        eye = jnp.eye(F, dtype=jnp.float32)
        if input_is_nhwc_flat:
            imgs = jnp.transpose(eye.reshape(F, H, W, C), (0, 3, 1, 2))
        else:
            imgs = eye.reshape(F, C, H, W)
        out = jax.lax.conv_general_dilated(
            imgs, w_oihw, window_strides=(1, 1), padding=((1, 1), (1, 1)),
            dimension_numbers=("NCHW", "OIHW", "NCHW"))
        return out.reshape(F, F)

    w_ih, w_hh = params["w_ih"], params["w_hh"]
    b_ih, b_hh = params["b_ih"], params["b_hh"]

    def gate_w(mat, g):          # (3Hd, Hd) slice -> (P, P) padded, transposed
        return pad_to(mat[g * Hd:(g + 1) * Hd].T, (P, P))

    def gate_b(vec, g):          # (3Hd,) slice -> (1, P) padded
        return pad_to(vec[g * Hd:(g + 1) * Hd], (P,)).reshape(1, P)

    w_i = jnp.concatenate([gate_w(w_ih, g) for g in range(3)], axis=1)  # (P,3P)
    w_h = jnp.concatenate([gate_w(w_hh, g) for g in range(3)], axis=1)  # (P,3P)
    b_i = jnp.concatenate([gate_b(b_ih, g) for g in range(3)], axis=1)  # (1,3P)
    b_h = jnp.concatenate([gate_b(b_hh, g) for g in range(3)], axis=1)  # (1,3P)

    return dict(
        m1=conv_as_matrix(params["conv1_w"], True).astype(jnp.bfloat16),
        b1=jnp.repeat(params["conv1_b"], H * W).reshape(1, F),
        m2=conv_as_matrix(params["conv2_w"], False).astype(jnp.bfloat16),
        b2=jnp.repeat(params["conv2_b"], H * W).reshape(1, F),
        fc1_w=pad_to(params["fc1_w"].T, (F, P)).astype(jnp.bfloat16),
        fc1_b=pad_to(params["fc1_b"], (P,)).reshape(1, P),
        w_i=w_i, b_i=b_i, w_h=w_h, b_h=b_h,
        fc2_w=pad_to(params["fc2_w"].T, (P, A_pad)),    # zero-padded cols/rows
        fc2_b=pad_to(params["fc2_b"], (A_pad,)).reshape(1, A_pad),
    )


# ------------------------------ Pallas wrapper -------------------------------

_VMEM = pl.BlockSpec(memory_space=pltpu.MemorySpace.VMEM)


def rnn_agent_forward(prep, obs, hidden_state, *, n_actions):
    """Pallas implementation of RNNAgent.forward(obs, hidden_state)."""
    is_single_obs = obs.ndim == 3
    if is_single_obs:
        obs = obs[None]
    B = obs.shape[0]
    F = prep["m1"].shape[0]
    P = prep["fc2_w"].shape[0]          # padded hidden width (128)
    A_pad = prep["fc2_w"].shape[1]      # padded action width (128)
    Hd = hidden_state.shape[-1]         # true hidden dim

    B_pad = ((B + 7) // 8) * 8          # sublane-dense batch

    x0 = obs.reshape(B, F).astype(jnp.float32)          # free NHWC flatten
    h_in = hidden_state.reshape(-1, Hd).astype(jnp.float32)
    x0 = jnp.pad(x0, ((0, B_pad - B), (0, 0)))
    h_in = jnp.pad(h_in, ((0, B_pad - h_in.shape[0]), (0, P - Hd)))

    args = (x0, h_in,
            prep["m1"], prep["b1"], prep["m2"], prep["b2"],
            prep["fc1_w"], prep["fc1_b"],
            prep["w_i"], prep["b_i"], prep["w_h"], prep["b_h"],
            prep["fc2_w"], prep["fc2_b"])

    flops = 2 * B_pad * (2 * F * F + F * P + 2 * P * 3 * P + P * A_pad)
    bytes_accessed = (sum(int(a.size) * a.dtype.itemsize for a in args)
                      + 4 * B_pad * (A_pad + P))
    cost = pl.CostEstimate(flops=int(flops),
                           transcendentals=int(3 * B_pad * P),
                           bytes_accessed=int(bytes_accessed))

    q_pad, h_pad = pl.pallas_call(
        rnn_agent_fused_kernel,
        out_shape=(jax.ShapeDtypeStruct((B_pad, A_pad), jnp.float32),
                   jax.ShapeDtypeStruct((B_pad, P), jnp.float32)),
        in_specs=[_VMEM] * len(args),
        out_specs=(_VMEM, _VMEM),
        compiler_params=pltpu.CompilerParams(vmem_limit_bytes=4 * 1024 * 1024),
        cost_estimate=cost,
    )(*args)

    # Slice back to module semantics OUTSIDE the kernel (stores stay dense).
    # For rollouts, keep h at width P across steps instead of re-padding.
    q = q_pad[:B, :n_actions]
    h_new = h_pad[:B, :Hd]
    if is_single_obs:
        return q[0], h_new[0]
    return q, h_new


# ----------------------- parameter init + JAX reference ---------------------


def init_params(key, input_shape, n_actions, hidden_dim):
    H, W, C = input_shape
    F = C * H * W
    ks = jax.random.split(key, 12)

    def u(k, shape, fan_in):
        bound = 1.0 / float(fan_in) ** 0.5
        return jax.random.uniform(k, shape, jnp.float32, -bound, bound)

    return dict(
        conv1_w=u(ks[0], (C, C, 3, 3), C * 9),      # OIHW (PyTorch layout)
        conv1_b=u(ks[1], (C,), C * 9),
        conv2_w=u(ks[2], (C, C, 3, 3), C * 9),
        conv2_b=u(ks[3], (C,), C * 9),
        fc1_w=u(ks[4], (hidden_dim, F), F),         # (out, in)
        fc1_b=u(ks[5], (hidden_dim,), F),
        w_ih=u(ks[6], (3 * hidden_dim, hidden_dim), hidden_dim),
        b_ih=u(ks[7], (3 * hidden_dim,), hidden_dim),
        w_hh=u(ks[8], (3 * hidden_dim, hidden_dim), hidden_dim),
        b_hh=u(ks[9], (3 * hidden_dim,), hidden_dim),
        fc2_w=u(ks[10], (n_actions, hidden_dim), hidden_dim),
        fc2_b=u(ks[11], (n_actions,), hidden_dim),
    )


def reference_forward(params, obs, hidden_state, hidden_dim):
    x = jnp.transpose(obs, (0, 3, 1, 2))  # NHWC -> NCHW (as PyTorch does)

    def conv(v, w, b):
        y = jax.lax.conv_general_dilated(
            v, w, window_strides=(1, 1), padding=((1, 1), (1, 1)),
            dimension_numbers=("NCHW", "OIHW", "NCHW"))
        return jax.nn.relu(y + b[None, :, None, None])

    y = conv(conv(x, params["conv1_w"], params["conv1_b"]),
             params["conv2_w"], params["conv2_b"])
    B = y.shape[0]
    xf = y.reshape(B, -1)
    a = jax.nn.relu(xf @ params["fc1_w"].T + params["fc1_b"])

    h = hidden_state.reshape(-1, hidden_dim)
    gi = a @ params["w_ih"].T + params["b_ih"]
    gh = h @ params["w_hh"].T + params["b_hh"]
    Hd = hidden_dim
    r = jax.nn.sigmoid(gi[:, :Hd] + gh[:, :Hd])
    z = jax.nn.sigmoid(gi[:, Hd:2 * Hd] + gh[:, Hd:2 * Hd])
    n = jnp.tanh(gi[:, 2 * Hd:] + r * gh[:, 2 * Hd:])
    h_new = (1.0 - z) * n + z * h
    q = h_new @ params["fc2_w"].T + params["fc2_b"]
    return q, h_new


# ----------------------------------- main -----------------------------------

if __name__ == "__main__":
    H, W, C = 8, 8, 4            # input_shape = (H, W, C) as in RNNAgent
    n_actions = 5
    hidden_dim = 32
    B = 2

    key = jax.random.PRNGKey(0)
    kp, ko, kh = jax.random.split(key, 3)
    params = init_params(kp, (H, W, C), n_actions, hidden_dim)
    prep = prepare_params(params, (H, W, C))     # hoisted, runs once

    obs = jax.random.normal(ko, (B, H, W, C), jnp.float32)          # NHWC obs
    hidden = jax.random.normal(kh, (B, hidden_dim), jnp.float32)

    fwd = jax.jit(rnn_agent_forward, static_argnames=("n_actions",))
    q, h = jax.block_until_ready(fwd(prep, obs, hidden, n_actions=n_actions))

    q_ref, h_ref = reference_forward(params, obs, hidden, hidden_dim)
    assert q.shape == (B, n_actions) and h.shape == (B, hidden_dim)
    # bf16 conv / fc1 weights => ~1e-2-level agreement with the f32 reference.
    assert jnp.allclose(q, q_ref, atol=3e-2, rtol=3e-2), "q mismatch vs reference"
    assert jnp.allclose(h, h_ref, atol=3e-2, rtol=3e-2), "h mismatch vs reference"

    print("KERNEL_OK")
</pallas_src>

<mosaic_0001>
module attributes {stable_mosaic.version = 11 : i64} {
  func.func @rnn_agent_fused_kernel(%arg0: memref<8x256xf32, #tpu.memory_space<vmem>>, %arg1: memref<8x128xf32, #tpu.memory_space<vmem>>, %arg2: memref<256x256xbf16, #tpu.memory_space<vmem>>, %arg3: memref<1x256xf32, #tpu.memory_space<vmem>>, %arg4: memref<256x256xbf16, #tpu.memory_space<vmem>>, %arg5: memref<1x256xf32, #tpu.memory_space<vmem>>, %arg6: memref<256x128xbf16, #tpu.memory_space<vmem>>, %arg7: memref<1x128xf32, #tpu.memory_space<vmem>>, %arg8: memref<128x384xf32, #tpu.memory_space<vmem>>, %arg9: memref<1x384xf32, #tpu.memory_space<vmem>>, %arg10: memref<128x384xf32, #tpu.memory_space<vmem>>, %arg11: memref<1x384xf32, #tpu.memory_space<vmem>>, %arg12: memref<128x128xf32, #tpu.memory_space<vmem>>, %arg13: memref<1x128xf32, #tpu.memory_space<vmem>>, %arg14: memref<8x128xf32, #tpu.memory_space<vmem>>, %arg15: memref<8x128xf32, #tpu.memory_space<vmem>>) attributes {dimension_semantics = [], scalar_prefetch = 0 : i64, scratch_operands = 0 : i64, tpu.core_type = #tpu.core_type<tc>} {
    %c0 = arith.constant 0 : index
    %c0_0 = arith.constant 0 : index
    %0 = vector.load %arg0[%c0, %c0_0] : memref<8x256xf32, #tpu.memory_space<vmem>>, vector<8x256xf32>
    %c0_1 = arith.constant 0 : index
    %c0_2 = arith.constant 0 : index
    %1 = vector.load %arg1[%c0_1, %c0_2] : memref<8x128xf32, #tpu.memory_space<vmem>>, vector<8x128xf32>
    %2 = arith.truncf %0 : vector<8x256xf32> to vector<8x256xbf16>
    %c0_3 = arith.constant 0 : index
    %c0_4 = arith.constant 0 : index
    %3 = vector.load %arg2[%c0_3, %c0_4] : memref<256x256xbf16, #tpu.memory_space<vmem>>, vector<256x256xbf16>
    %cst = arith.constant dense<0.000000e+00> : vector<8x256xf32>
    %4 = tpu.matmul %2, %3, %cst {dimension_numbers = #tpu.dot_dimension_numbers<[1], [0], [0], [1], [0, 0, 1, 1], [], []>} : vector<8x256xbf16>, vector<256x256xbf16>, vector<8x256xf32> -> vector<8x256xf32>
    %c0_5 = arith.constant 0 : index
    %c0_6 = arith.constant 0 : index
    %5 = vector.load %arg3[%c0_5, %c0_6] : memref<1x256xf32, #tpu.memory_space<vmem>>, vector<1x256xf32>
    %6 = vector.broadcast %5 : vector<1x256xf32> to vector<8x256xf32>
    %7 = arith.addf %4, %6 : vector<8x256xf32>
    %cst_7 = arith.constant 0.000000e+00 : f32
    %8 = vector.broadcast %cst_7 : f32 to vector<8x256xf32>
    %9 = arith.maximumf %7, %8 : vector<8x256xf32>
    %10 = arith.truncf %9 : vector<8x256xf32> to vector<8x256xbf16>
    %c0_8 = arith.constant 0 : index
    %c0_9 = arith.constant 0 : index
    %11 = vector.load %arg4[%c0_8, %c0_9] : memref<256x256xbf16, #tpu.memory_space<vmem>>, vector<256x256xbf16>
    %cst_10 = arith.constant dense<0.000000e+00> : vector<8x256xf32>
    %12 = tpu.matmul %10, %11, %cst_10 {dimension_numbers = #tpu.dot_dimension_numbers<[1], [0], [0], [1], [0, 0, 1, 1], [], []>} : vector<8x256xbf16>, vector<256x256xbf16>, vector<8x256xf32> -> vector<8x256xf32>
    %c0_11 = arith.constant 0 : index
    %c0_12 = arith.constant 0 : index
    %13 = vector.load %arg5[%c0_11, %c0_12] : memref<1x256xf32, #tpu.memory_space<vmem>>, vector<1x256xf32>
    %14 = vector.broadcast %13 : vector<1x256xf32> to vector<8x256xf32>
    %15 = arith.addf %12, %14 : vector<8x256xf32>
    %cst_13 = arith.constant 0.000000e+00 : f32
    %16 = vector.broadcast %cst_13 : f32 to vector<8x256xf32>
    %17 = arith.maximumf %15, %16 : vector<8x256xf32>
    %18 = arith.truncf %17 : vector<8x256xf32> to vector<8x256xbf16>
    %c0_14 = arith.constant 0 : index
    %c0_15 = arith.constant 0 : index
    %19 = vector.load %arg6[%c0_14, %c0_15] : memref<256x128xbf16, #tpu.memory_space<vmem>>, vector<256x128xbf16>
    %cst_16 = arith.constant dense<0.000000e+00> : vector<8x128xf32>
    %20 = tpu.matmul %18, %19, %cst_16 {dimension_numbers = #tpu.dot_dimension_numbers<[1], [0], [0], [1], [0, 0, 1, 1], [], []>} : vector<8x256xbf16>, vector<256x128xbf16>, vector<8x128xf32> -> vector<8x128xf32>
    %c0_17 = arith.constant 0 : index
    %c0_18 = arith.constant 0 : index
    %21 = vector.load %arg7[%c0_17, %c0_18] : memref<1x128xf32, #tpu.memory_space<vmem>>, vector<1x128xf32>
    %22 = vector.broadcast %21 : vector<1x128xf32> to vector<8x128xf32>
    %23 = arith.addf %20, %22 : vector<8x128xf32>
    %cst_19 = arith.constant 0.000000e+00 : f32
    %24 = vector.broadcast %cst_19 : f32 to vector<8x128xf32>
    %25 = arith.maximumf %23, %24 : vector<8x128xf32>
    %c0_20 = arith.constant 0 : index
    %c0_21 = arith.constant 0 : index
    %26 = vector.load %arg8[%c0_20, %c0_21] : memref<128x384xf32, #tpu.memory_space<vmem>>, vector<128x384xf32>
    %cst_22 = arith.constant dense<0.000000e+00> : vector<8x384xf32>
    %27 = tpu.matmul %25, %26, %cst_22 {dimension_numbers = #tpu.dot_dimension_numbers<[1], [0], [0], [1], [0, 0, 1, 1], [], []>} : vector<8x128xf32>, vector<128x384xf32>, vector<8x384xf32> -> vector<8x384xf32>
    %c0_23 = arith.constant 0 : index
    %c0_24 = arith.constant 0 : index
    %28 = vector.load %arg9[%c0_23, %c0_24] : memref<1x384xf32, #tpu.memory_space<vmem>>, vector<1x384xf32>
    %29 = vector.broadcast %28 : vector<1x384xf32> to vector<8x384xf32>
    %30 = arith.addf %27, %29 : vector<8x384xf32>
    %c0_25 = arith.constant 0 : index
    %c0_26 = arith.constant 0 : index
    %31 = vector.load %arg10[%c0_25, %c0_26] : memref<128x384xf32, #tpu.memory_space<vmem>>, vector<128x384xf32>
    %cst_27 = arith.constant dense<0.000000e+00> : vector<8x384xf32>
    %32 = tpu.matmul %1, %31, %cst_27 {dimension_numbers = #tpu.dot_dimension_numbers<[1], [0], [0], [1], [0, 0, 1, 1], [], []>} : vector<8x128xf32>, vector<128x384xf32>, vector<8x384xf32> -> vector<8x384xf32>
    %c0_28 = arith.constant 0 : index
    %c0_29 = arith.constant 0 : index
    %33 = vector.load %arg11[%c0_28, %c0_29] : memref<1x384xf32, #tpu.memory_space<vmem>>, vector<1x384xf32>
    %34 = vector.broadcast %33 : vector<1x384xf32> to vector<8x384xf32>
    %35 = arith.addf %32, %34 : vector<8x384xf32>
    %36 = vector.extract_strided_slice %30 {offsets = [0, 0], sizes = [8, 128], strides = [1, 1]} : vector<8x384xf32> to vector<8x128xf32>
    %37 = vector.extract_strided_slice %35 {offsets = [0, 0], sizes = [8, 128], strides = [1, 1]} : vector<8x384xf32> to vector<8x128xf32>
    %38 = arith.addf %36, %37 : vector<8x128xf32>
    %cst_30 = arith.constant 5.000000e-01 : f32
    %39 = vector.broadcast %cst_30 : f32 to vector<8x128xf32>
    %40 = arith.mulf %39, %38 : vector<8x128xf32>
    %41 = math.tanh %40 : vector<8x128xf32>
    %cst_31 = arith.constant 5.000000e-01 : f32
    %42 = vector.broadcast %cst_31 : f32 to vector<8x128xf32>
    %43 = arith.mulf %42, %41 : vector<8x128xf32>
    %cst_32 = arith.constant 5.000000e-01 : f32
    %44 = vector.broadcast %cst_32 : f32 to vector<8x128xf32>
    %45 = arith.addf %43, %44 : vector<8x128xf32>
    %46 = vector.extract_strided_slice %30 {offsets = [0, 128], sizes = [8, 128], strides = [1, 1]} : vector<8x384xf32> to vector<8x128xf32>
    %47 = vector.extract_strided_slice %35 {offsets = [0, 128], sizes = [8, 128], strides = [1, 1]} : vector<8x384xf32> to vector<8x128xf32>
    %48 = arith.addf %46, %47 : vector<8x128xf32>
    %cst_33 = arith.constant 5.000000e-01 : f32
    %49 = vector.broadcast %cst_33 : f32 to vector<8x128xf32>
    %50 = arith.mulf %49, %48 : vector<8x128xf32>
    %51 = math.tanh %50 : vector<8x128xf32>
    %cst_34 = arith.constant 5.000000e-01 : f32
    %52 = vector.broadcast %cst_34 : f32 to vector<8x128xf32>
    %53 = arith.mulf %52, %51 : vector<8x128xf32>
    %cst_35 = arith.constant 5.000000e-01 : f32
    %54 = vector.broadcast %cst_35 : f32 to vector<8x128xf32>
    %55 = arith.addf %53, %54 : vector<8x128xf32>
    %56 = vector.extract_strided_slice %30 {offsets = [0, 256], sizes = [8, 128], strides = [1, 1]} : vector<8x384xf32> to vector<8x128xf32>
    %57 = vector.extract_strided_slice %35 {offsets = [0, 256], sizes = [8, 128], strides = [1, 1]} : vector<8x384xf32> to vector<8x128xf32>
    %58 = arith.mulf %45, %57 : vector<8x128xf32>
    %59 = arith.addf %56, %58 : vector<8x128xf32>
    %60 = math.tanh %59 : vector<8x128xf32>
    %cst_36 = arith.constant 1.000000e+00 : f32
    %61 = vector.broadcast %cst_36 : f32 to vector<8x128xf32>
    %62 = arith.subf %61, %55 : vector<8x128xf32>
    %63 = arith.mulf %62, %60 : vector<8x128xf32>
    %64 = arith.mulf %55, %1 : vector<8x128xf32>
    %65 = arith.addf %63, %64 : vector<8x128xf32>
    %c0_37 = arith.constant 0 : index
    %c0_38 = arith.constant 0 : index
    %66 = vector.load %arg12[%c0_37, %c0_38] : memref<128x128xf32, #tpu.memory_space<vmem>>, vector<128x128xf32>
    %cst_39 = arith.constant dense<0.000000e+00> : vector<8x128xf32>
    %67 = tpu.matmul %65, %66, %cst_39 {dimension_numbers = #tpu.dot_dimension_numbers<[1], [0], [0], [1], [0, 0, 1, 1], [], []>} : vector<8x128xf32>, vector<128x128xf32>, vector<8x128xf32> -> vector<8x128xf32>
    %c0_40 = arith.constant 0 : index
    %c0_41 = arith.constant 0 : index
    %68 = vector.load %arg13[%c0_40, %c0_41] : memref<1x128xf32, #tpu.memory_space<vmem>>, vector<1x128xf32>
    %69 = vector.broadcast %68 : vector<1x128xf32> to vector<8x128xf32>
    %70 = arith.addf %67, %69 : vector<8x128xf32>
    %c0_42 = arith.constant 0 : index
    %c0_43 = arith.constant 0 : index
    %71 = vector.load %arg14[%c0_42, %c0_43] : memref<8x128xf32, #tpu.memory_space<vmem>>, vector<8x128xf32>
    tpu.vector_store %arg14[%c0_42, %c0_43], %70 {strides = array<i32>} : memref<8x128xf32, #tpu.memory_space<vmem>>, vector<8x128xf32>,
    %c0_44 = arith.constant 0 : index
    %c0_45 = arith.constant 0 : index
    %72 = vector.load %arg15[%c0_44, %c0_45] : memref<8x128xf32, #tpu.memory_space<vmem>>, vector<8x128xf32>
    tpu.vector_store %arg15[%c0_44, %c0_45], %65 {strides = array<i32>} : memref<8x128xf32, #tpu.memory_space<vmem>>, vector<8x128xf32>,
    return
  }
}

</mosaic_0001>

<llo_original>
// kernel: rnn_agent_forward.1
$region0: #{rnn_agent_forward.1}
  #allocation0 [shape = 'u32[]', space=smem, size = 0x4, offset = 0x4, fixed_abs, tag = 'smem constant byte address 0x4 - core index']
  #allocation1 [shape = 'u32[144,128]{1,0:T(1,128)}', space=vmem, size = 0x12000, scoped, tag = 'internal scratch']
  %s0 = inlined_call_operand.vmem [shape: f32[8,256], index: 0, kind: input, shape index: {}]
  %s1 = inlined_call_operand.vmem [shape: f32[8,128], index: 1, kind: input, shape index: {}]
  %s2 = inlined_call_operand.vmem [shape: bf16[256,256], index: 2, kind: input, shape index: {}]
  %s3 = inlined_call_operand.vmem [shape: f32[1,256], index: 3, kind: input, shape index: {}]
  %s4 = inlined_call_operand.hbm [shape: bf16[256,256], index: 4, kind: input, shape index: {}]
  %s5 = inlined_call_operand.vmem [shape: f32[1,256], index: 5, kind: input, shape index: {}]
  %s6 = inlined_call_operand.hbm [shape: bf16[256,128], index: 6, kind: input, shape index: {}]
  %s7 = inlined_call_operand.vmem [shape: f32[1,128], index: 7, kind: input, shape index: {}]
  %s8 = inlined_call_operand.hbm [shape: f32[128,384], index: 8, kind: input, shape index: {}]
  %s9 = inlined_call_operand.vmem [shape: f32[1,384], index: 9, kind: input, shape index: {}]
  %s10 = inlined_call_operand.hbm [shape: f32[128,384], index: 10, kind: input, shape index: {}]
  %s11 = inlined_call_operand.vmem [shape: f32[1,384], index: 11, kind: input, shape index: {}]
  %s12 = inlined_call_operand.hbm [shape: f32[128,128], index: 12, kind: input, shape index: {}]
  %s13 = inlined_call_operand.vmem [shape: f32[1,128], index: 13, kind: input, shape index: {}]
  %s14 = inlined_call_operand.vmem [shape: f32[8,128], index: 14, kind: output, shape index: {0}]
  %s15 = inlined_call_operand.vmem [shape: f32[8,128], index: 15, kind: output, shape index: {1}]
  %16 = xla_tuple %s14, %s15
  %s17 = sld [smem:[#allocation0]]
  $region94: #{rnn_agent_forward.1} parent=0
    _
  %s19 = ssub.s32 1, %s17
  %s20 = scalar_select 0, %s19, %s17
  $region1: #{rnn_agent_forward.1} parent=0
    #allocation2 [shape = 'u8[131072]{0}', space=vmem, size = 0x20000, scoped, tag = 'input window, operand 4, single buffered']
    #allocation3 [shape = 's32[1]{0}', space=sflag, size = 0x4, scoped, tag = 'scoped memory for rnn_agent_forward.1']
    #allocation4 [shape = 'u8[65536]{0}', space=vmem, size = 0x10000, scoped, tag = 'input window, operand 6, single buffered']
    #allocation5 [shape = 's32[1]{0}', space=sflag, size = 0x4, scoped, tag = 'scoped memory for rnn_agent_forward.1']
    #allocation6 [shape = 'u8[196608]{0}', space=vmem, size = 0x30000, scoped, tag = 'input window, operand 8, single buffered']
    #allocation7 [shape = 'u8[196608]{0}', space=vmem, size = 0x30000, scoped, tag = 'input window, operand 10, single buffered']
    #allocation8 [shape = 's32[1]{0}', space=sflag, size = 0x4, scoped, tag = 'scoped memory for rnn_agent_forward.1']
    #allocation9 [shape = 'u8[65536]{0}', space=vmem, size = 0x10000, scoped, tag = 'input window, operand 12, single buffered']
    %21 = vsyncpa [#allocation3], 0
    %22 = vsyncpa [#allocation5], 0
    %23 = vsyncpa [#allocation8], 0
    // Predicated region
    $region2: #{rnn_agent_forward.1} parent=1 // pred_check
      _
    $region3: #{rnn_agent_forward.1} parent=1 // pred_check_branch
      %25 = sbr.rel (0) target = $region5
    $region4: #{rnn_agent_forward.1} parent=1 // pred_region
      _
    $region5: #{rnn_agent_forward.1} parent=1 // pred_fallthru
      _
    // Predicated region
    $region6: #{rnn_agent_forward.1} parent=1 // pred_check
      _
    $region7: #{rnn_agent_forward.1} parent=1 // pred_check_branch
      %27 = sbr.rel (0) target = $region9
    $region8: #{rnn_agent_forward.1} parent=1 // pred_region
      _
    $region9: #{rnn_agent_forward.1} parent=1 // pred_fallthru
      _
    // Predicated region
    $region10: #{rnn_agent_forward.1} parent=1 // pred_check
      _
    $region11: #{rnn_agent_forward.1} parent=1 // pred_check_branch
      %29 = sbr.rel (0) target = $region13
    $region12: #{rnn_agent_forward.1} parent=1 // pred_region
      _
    $region13: #{rnn_agent_forward.1} parent=1 // pred_fallthru
      _
    // Predicated region
    $region14: #{rnn_agent_forward.1} parent=1 // pred_check
      _
    $region15: #{rnn_agent_forward.1} parent=1 // pred_check_branch
      %31 = sbr.rel (0) target = $region17
    $region16: #{rnn_agent_forward.1} parent=1 // pred_region
      _
    $region17: #{rnn_agent_forward.1} parent=1 // pred_fallthru
      _
    // Predicated region
    $region18: #{rnn_agent_forward.1} parent=1 // pred_check
      _
    $region19: #{rnn_agent_forward.1} parent=1 // pred_check_branch
      %33 = sbr.rel (0) target = $region21
    $region20: #{rnn_agent_forward.1} parent=1 // pred_region
      %s35 = ssub.s32 4096, 4096
      %36 = vsyncadd [#allocation3], %s35
      %s37 = sshll.u32 [#allocation2], 4
      %s38 = int_to_ptr.vmem [resolvable:$true] %s37
      %43 = dma.hbm_to_vmem [thread:$0]  %s4, 4096, %s38, [#allocation3], 128, 128, 8
    $region21: #{rnn_agent_forward.1} parent=1 // pred_fallthru
      _
    // Predicated region
    $region22: #{rnn_agent_forward.1} parent=1 // pred_check
      _
    $region23: #{rnn_agent_forward.1} parent=1 // pred_check_branch
      %45 = sbr.rel (0) target = $region25
    $region24: #{rnn_agent_forward.1} parent=1 // pred_region
      _
    $region25: #{rnn_agent_forward.1} parent=1 // pred_fallthru
      _
    // Predicated region
    $region26: #{rnn_agent_forward.1} parent=1 // pred_check
      _
    $region27: #{rnn_agent_forward.1} parent=1 // pred_check_branch
      %47 = sbr.rel (0) target = $region29
    $region28: #{rnn_agent_forward.1} parent=1 // pred_region
      %s49 = ssub.s32 2048, 2048
      %50 = vsyncadd [#allocation5], %s49
      %s51 = sshll.u32 [#allocation4], 4
      %s52 = int_to_ptr.vmem [resolvable:$true] %s51
      %57 = dma.hbm_to_vmem [thread:$0]  %s6, 2048, %s52, [#allocation5], 64, 64, 4
    $region29: #{rnn_agent_forward.1} parent=1 // pred_fallthru
      _
    // Predicated region
    $region30: #{rnn_agent_forward.1} parent=1 // pred_check
      _
    $region31: #{rnn_agent_forward.1} parent=1 // pred_check_branch
      %59 = sbr.rel (0) target = $region33
    $region32: #{rnn_agent_forward.1} parent=1 // pred_region
      _
    $region33: #{rnn_agent_forward.1} parent=1 // pred_fallthru
      _
    // Predicated region
    $region34: #{rnn_agent_forward.1} parent=1 // pred_check
      _
    $region35: #{rnn_agent_forward.1} parent=1 // pred_check_branch
      %61 = sbr.rel (0) target = $region37
    $region36: #{rnn_agent_forward.1} parent=1 // pred_region
      %s63 = ssub.s32 6144, 6144
      %64 = vsyncadd [#allocation5], %s63
      %s65 = sshll.u32 [#allocation6], 4
      %s66 = int_to_ptr.vmem [resolvable:$true] %s65
      %71 = dma.hbm_to_vmem [thread:$0]  %s8, 6144, %s66, [#allocation5], 384, 384, 24
    $region37: #{rnn_agent_forward.1} parent=1 // pred_fallthru
      _
    // Predicated region
    $region38: #{rnn_agent_forward.1} parent=1 // pred_check
      _
    $region39: #{rnn_agent_forward.1} parent=1 // pred_check_branch
      %73 = sbr.rel (0) target = $region41
    $region40: #{rnn_agent_forward.1} parent=1 // pred_region
      _
    $region41: #{rnn_agent_forward.1} parent=1 // pred_fallthru
      _
    // Predicated region
    $region42: #{rnn_agent_forward.1} parent=1 // pred_check
      _
    $region43: #{rnn_agent_forward.1} parent=1 // pred_check_branch
      %75 = sbr.rel (0) target = $region45
    $region44: #{rnn_agent_forward.1} parent=1 // pred_region
      %s77 = ssub.s32 6144, 6144
      %78 = vsyncadd [#allocation8], %s77
      %s79 = sshll.u32 [#allocation7], 4
      %s80 = int_to_ptr.vmem [resolvable:$true] %s79
      %85 = dma.hbm_to_vmem [thread:$0]  %s10, 6144, %s80, [#allocation8], 384, 384, 24
    $region45: #{rnn_agent_forward.1} parent=1 // pred_fallthru
      _
    // Predicated region
    $region46: #{rnn_agent_forward.1} parent=1 // pred_check
      _
    $region47: #{rnn_agent_forward.1} parent=1 // pred_check_branch
      %87 = sbr.rel (0) target = $region49
    $region48: #{rnn_agent_forward.1} parent=1 // pred_region
      _
    $region49: #{rnn_agent_forward.1} parent=1 // pred_fallthru
      _
    // Predicated region
    $region50: #{rnn_agent_forward.1} parent=1 // pred_check
      _
    $region51: #{rnn_agent_forward.1} parent=1 // pred_check_branch
      %89 = sbr.rel (0) target = $region53
    $region52: #{rnn_agent_forward.1} parent=1 // pred_region
      %s91 = ssub.s32 2048, 2048
      %92 = vsyncadd [#allocation8], %s91
      %s93 = sshll.u32 [#allocation9], 4
      %s94 = int_to_ptr.vmem [resolvable:$true] %s93
      %99 = dma.hbm_to_vmem [thread:$0]  %s12, 2048, %s94, [#allocation8], 128, 128, 8
    $region53: #{rnn_agent_forward.1} parent=1 // pred_fallthru
      _
    // Predicated region
    $region54: #{rnn_agent_forward.1} parent=1 // pred_check
      _
    $region55: #{rnn_agent_forward.1} parent=1 // pred_check_branch
      %101 = sbr.rel (0) target = $region57
    $region56: #{rnn_agent_forward.1} parent=1 // pred_region
      _
    $region57: #{rnn_agent_forward.1} parent=1 // pred_fallthru
      _
    // Predicated region
    $region58: #{rnn_agent_forward.1} parent=1 // pred_check
      _
    $region59: #{rnn_agent_forward.1} parent=1 // pred_check_branch
      %103 = sbr.rel (0) target = $region61
    $region60: #{rnn_agent_forward.1} parent=1 // pred_region
      %104 = dma.done [#allocation3], 4096
    $region61: #{rnn_agent_forward.1} parent=1 // pred_fallthru
      _
    // Predicated region
    $region62: #{rnn_agent_forward.1} parent=1 // pred_check
      _
    $region63: #{rnn_agent_forward.1} parent=1 // pred_check_branch
      %106 = sbr.rel (0) target = $region65
    $region64: #{rnn_agent_forward.1} parent=1 // pred_region
      %107 = dma.done [#allocation5], 2048
    $region65: #{rnn_agent_forward.1} parent=1 // pred_fallthru
      _
    // Predicated region
    $region66: #{rnn_agent_forward.1} parent=1 // pred_check
      _
    $region67: #{rnn_agent_forward.1} parent=1 // pred_check_branch
      %109 = sbr.rel (0) target = $region69
    $region68: #{rnn_agent_forward.1} parent=1 // pred_region
      %110 = dma.done [#allocation5], 6144
    $region69: #{rnn_agent_forward.1} parent=1 // pred_fallthru
      _
    // Predicated region
    $region70: #{rnn_agent_forward.1} parent=1 // pred_check
      _
    $region71: #{rnn_agent_forward.1} parent=1 // pred_check_branch
      %112 = sbr.rel (0) target = $region73
    $region72: #{rnn_agent_forward.1} parent=1 // pred_region
      %113 = dma.done [#allocation8], 6144
    $region73: #{rnn_agent_forward.1} parent=1 // pred_fallthru
      _
    // Predicated region
    $region74: #{rnn_agent_forward.1} parent=1 // pred_check
      _
    $region75: #{rnn_agent_forward.1} parent=1 // pred_check_branch
      %115 = sbr.rel (0) target = $region77
    $region76: #{rnn_agent_forward.1} parent=1 // pred_region
      %116 = dma.done [#allocation8], 2048
    $region77: #{rnn_agent_forward.1} parent=1 // pred_fallthru
      _
    %v118 = vld [vmem:[%s0] sm:$0xff]
    %v119 = vld [vmem:[%s0 + $0x8] sm:$0xff]
    %v120 = vld [vmem:[%s1] sm:$0xff]
    %v121 = vpack.c.bf16 %v118, %v118
    %v122 = vpack.c.bf16 %v119, %v119
    %v123 = vld [vmem:[%s2] sm:$0xff]
    %v124 = vld [vmem:[%s2 + $0x8] sm:$0xff]
    %v125 = vld [vmem:[%s2 + $0x10] sm:$0xff]
    %v126 = vld [vmem:[%s2 + $0x18] sm:$0xff]
    %v127 = vld [vmem:[%s2 + $0x20] sm:$0xff]
    %v128 = vld [vmem:[%s2 + $0x28] sm:$0xff]
    %v129 = vld [vmem:[%s2 + $0x30] sm:$0xff]
    %v130 = vld [vmem:[%s2 + $0x38] sm:$0xff]
    %v131 = vld [vmem:[%s2 + $0x40] sm:$0xff]
    %v132 = vld [vmem:[%s2 + $0x48] sm:$0xff]
    %v133 = vld [vmem:[%s2 + $0x50] sm:$0xff]
    %v134 = vld [vmem:[%s2 + $0x58] sm:$0xff]
    %v135 = vld [vmem:[%s2 + $0x60] sm:$0xff]
    %v136 = vld [vmem:[%s2 + $0x68] sm:$0xff]
    %v137 = vld [vmem:[%s2 + $0x70] sm:$0xff]
    %v138 = vld [vmem:[%s2 + $0x78] sm:$0xff]
    %v139 = vld [vmem:[%s2 + $0x80] sm:$0xff]
    %v140 = vld [vmem:[%s2 + $0x88] sm:$0xff]
    %v141 = vld [vmem:[%s2 + $0x90] sm:$0xff]
    %v142 = vld [vmem:[%s2 + $0x98] sm:$0xff]
    %v143 = vld [vmem:[%s2 + $0xa0] sm:$0xff]
    %v144 = vld [vmem:[%s2 + $0xa8] sm:$0xff]
    %v145 = vld [vmem:[%s2 + $0xb0] sm:$0xff]
    %v146 = vld [vmem:[%s2 + $0xb8] sm:$0xff]
    %v147 = vld [vmem:[%s2 + $0xc0] sm:$0xff]
    %v148 = vld [vmem:[%s2 + $0xc8] sm:$0xff]
    %v149 = vld [vmem:[%s2 + $0xd0] sm:$0xff]
    %v150 = vld [vmem:[%s2 + $0xd8] sm:$0xff]
    %v151 = vld [vmem:[%s2 + $0xe0] sm:$0xff]
    %v152 = vld [vmem:[%s2 + $0xe8] sm:$0xff]
    %v153 = vld [vmem:[%s2 + $0xf0] sm:$0xff]
    %v154 = vld [vmem:[%s2 + $0xf8] sm:$0xff]
    %v155 = vld [vmem:[%s3] sm:$0x3]
    %v157 = vlaneseq
    %v158 = vshrl.u32 %v157, 7
    %v159 = vsub.s32 0, %v158
    %v160 = vrot.slane %v155, %v159
    %v161 = vlaneseq
    %v162 = vshrl.u32 %v161, 7
    %v163 = vsub.s32 1, %v162
    %v164 = vrot.slane %v155, %v163
    %v199 = vunpack.c.l.b16 %v123
    %v200 = vunpack.c.h.b16 %v123
    %v201 = vunpack.c.l.b16 %v124
    %v202 = vunpack.c.h.b16 %v124
    %v203 = vunpack.c.l.b16 %v125
    %v204 = vunpack.c.h.b16 %v125
    %v205 = vunpack.c.l.b16 %v126
    %v206 = vunpack.c.h.b16 %v126
    %v207 = vunpack.c.l.b16 %v127
    %v208 = vunpack.c.h.b16 %v127
    %v209 = vunpack.c.l.b16 %v128
    %v210 = vunpack.c.h.b16 %v128
    %v211 = vunpack.c.l.b16 %v129
    %v212 = vunpack.c.h.b16 %v129
    %v213 = vunpack.c.l.b16 %v130
    %v214 = vunpack.c.h.b16 %v130
    %v215 = vunpack.c.l.b16 %v131
    %v216 = vunpack.c.h.b16 %v131
    %v217 = vunpack.c.l.b16 %v132
    %v218 = vunpack.c.h.b16 %v132
    %v219 = vunpack.c.l.b16 %v133
    %v220 = vunpack.c.h.b16 %v133
    %v221 = vunpack.c.l.b16 %v134
    %v222 = vunpack.c.h.b16 %v134
    %v223 = vunpack.c.l.b16 %v135
    %v224 = vunpack.c.h.b16 %v135
    %v225 = vunpack.c.l.b16 %v136
    %v226 = vunpack.c.h.b16 %v136
    %v227 = vunpack.c.l.b16 %v137
    %v228 = vunpack.c.h.b16 %v137
    %v229 = vunpack.c.l.b16 %v138
    %v230 = vunpack.c.h.b16 %v138
    %v231 = vunpack.c.l.b16 %v139
    %v232 = vunpack.c.h.b16 %v139
    %v233 = vunpack.c.l.b16 %v140
    %v234 = vunpack.c.h.b16 %v140
    %v235 = vunpack.c.l.b16 %v141
    %v236 = vunpack.c.h.b16 %v141
    %v237 = vunpack.c.l.b16 %v142
    %v238 = vunpack.c.h.b16 %v142
    %v239 = vunpack.c.l.b16 %v143
    %v240 = vunpack.c.h.b16 %v143
    %v241 = vunpack.c.l.b16 %v144
    %v242 = vunpack.c.h.b16 %v144
    %v243 = vunpack.c.l.b16 %v145
    %v244 = vunpack.c.h.b16 %v145
    %v245 = vunpack.c.l.b16 %v146
    %v246 = vunpack.c.h.b16 %v146
    %v247 = vunpack.c.l.b16 %v147
    %v248 = vunpack.c.h.b16 %v147
    %v249 = vunpack.c.l.b16 %v148
    %v250 = vunpack.c.h.b16 %v148
    %v251 = vunpack.c.l.b16 %v149
    %v252 = vunpack.c.h.b16 %v149
    %v253 = vunpack.c.l.b16 %v150
    %v254 = vunpack.c.h.b16 %v150
    %v255 = vunpack.c.l.b16 %v151
    %v256 = vunpack.c.h.b16 %v151
    %v257 = vunpack.c.l.b16 %v152
    %v258 = vunpack.c.h.b16 %v152
    %v259 = vunpack.c.l.b16 %v153
    %v260 = vunpack.c.h.b16 %v153
    %v261 = vunpack.c.l.b16 %v154
    %v262 = vunpack.c.h.b16 %v154
    %v263 = vpack.c.b16 %v201, %v199
    %v264 = vpack.c.b16 %v202, %v200
    %v265 = vpack.c.b16 %v205, %v203
    %v266 = vpack.c.b16 %v206, %v204
    %v267 = vpack.c.b16 %v209, %v207
    %v268 = vpack.c.b16 %v210, %v208
    %v269 = vpack.c.b16 %v213, %v211
    %v270 = vpack.c.b16 %v214, %v212
    %v271 = vpack.c.b16 %v217, %v215
    %v272 = vpack.c.b16 %v218, %v216
    %v273 = vpack.c.b16 %v221, %v219
    %v274 = vpack.c.b16 %v222, %v220
    %v275 = vpack.c.b16 %v225, %v223
    %v276 = vpack.c.b16 %v226, %v224
    %v277 = vpack.c.b16 %v229, %v227
    %v278 = vpack.c.b16 %v230, %v228
    %v279 = vpack.c.b16 %v233, %v231
    %v280 = vpack.c.b16 %v234, %v232
    %v281 = vpack.c.b16 %v237, %v235
    %v282 = vpack.c.b16 %v238, %v236
    %v283 = vpack.c.b16 %v241, %v239
    %v284 = vpack.c.b16 %v242, %v240
    %v285 = vpack.c.b16 %v245, %v243
    %v286 = vpack.c.b16 %v246, %v244
    %v287 = vpack.c.b16 %v249, %v247
    %v288 = vpack.c.b16 %v250, %v248
    %v289 = vpack.c.b16 %v253, %v251
    %v290 = vpack.c.b16 %v254, %v252
    %v291 = vpack.c.b16 %v257, %v255
    %v292 = vpack.c.b16 %v258, %v256
    %v293 = vpack.c.b16 %v261, %v259
    %v294 = vpack.c.b16 %v262, %v260
    %327 = vmatprep.subr.bf16.mxu0 %v264
    %328 = vmatpush1.bf16.msra.mxu0 %v263
    %329 = vmatprep.subr.bf16.mxu0 %v266
    %330 = vmatpush1.bf16.msra.mxu0 %v265
    %331 = vmatprep.subr.bf16.mxu0 %v268
    %332 = vmatpush1.bf16.msra.mxu0 %v267
    %333 = vmatprep.subr.bf16.mxu0 %v270
    %334 = vmatpush1.bf16.msra.mxu0 %v269
    %335 = vmatprep.subr.bf16.mxu0 %v272
    %336 = vmatpush1.bf16.msra.mxu0 %v271
    %337 = vmatprep.subr.bf16.mxu0 %v274
    %338 = vmatpush1.bf16.msra.mxu0 %v273
    %339 = vmatprep.subr.bf16.mxu0 %v276
    %340 = vmatpush1.bf16.msra.mxu0 %v275
    %341 = vmatprep.subr.bf16.mxu0 %v278
    %342 = vmatpush1.bf16.msra.mxu0 %v277
    %343 = vmatprep.subr.bf16.mxu0 %v280
    %344 = vmatpush1.bf16.msra.mxu0 %v279
    %345 = vmatprep.subr.bf16.mxu0 %v282
    %346 = vmatpush1.bf16.msra.mxu0 %v281
    %347 = vmatprep.subr.bf16.mxu0 %v284
    %348 = vmatpush1.bf16.msra.mxu0 %v283
    %349 = vmatprep.subr.bf16.mxu0 %v286
    %350 = vmatpush1.bf16.msra.mxu0 %v285
    %351 = vmatprep.subr.bf16.mxu0 %v288
    %352 = vmatpush1.bf16.msra.mxu0 %v287
    %353 = vmatprep.subr.bf16.mxu0 %v290
    %354 = vmatpush1.bf16.msra.mxu0 %v289
    %355 = vmatprep.subr.bf16.mxu0 %v292
    %356 = vmatpush1.bf16.msra.mxu0 %v291
    %357 = vmatprep.subr.bf16.mxu0 %v294
    %358 = vmatpush1.bf16.msra.mxu0 %v293
    %359 = vmatprep.mubr.bf16.mxu0 %v122
    %360 = vmatmul.mubr.bf16.gmra.mrb[0].mxu0 %v121
    %v361 = vpop.f32.mrb[0].mxu0
    %v362 = vadd.f32 %v160, %v361
    %v363 = vpop.f32.mrb[0].mxu0
    %v364 = vadd.f32 %v164, %v363
    %v365 = vpop.f32.mrb[0].mxu0
    %v366 = vpop.f32.mrb[0].mxu0
    %367 = vdwg.mxu0
    %v368 = vmax.f32 %v362, 0.0
    %v369 = vmax.f32 %v364, 0.0
    %v370 = vpack.c.bf16 %v368, %v368
    %v371 = vpack.c.bf16 %v369, %v369
    %v372 = vld [vmem:[#allocation2] sm:$0xff]
    %v373 = vld [vmem:[#allocation2 + $0x8] sm:$0xff]
    %v374 = vld [vmem:[#allocation2 + $0x10] sm:$0xff]
    %v375 = vld [vmem:[#allocation2 + $0x18] sm:$0xff]
    %v376 = vld [vmem:[#allocation2 + $0x20] sm:$0xff]
    %v377 = vld [vmem:[#allocation2 + $0x28] sm:$0xff]
    %v378 = vld [vmem:[#allocation2 + $0x30] sm:$0xff]
    %v379 = vld [vmem:[#allocation2 + $0x38] sm:$0xff]
    %v380 = vld [vmem:[#allocation2 + $0x40] sm:$0xff]
    %v381 = vld [vmem:[#allocation2 + $0x48] sm:$0xff]
    %v382 = vld [vmem:[#allocation2 + $0x50] sm:$0xff]
    %v383 = vld [vmem:[#allocation2 + $0x58] sm:$0xff]
    %v384 = vld [vmem:[#allocation2 + $0x60] sm:$0xff]
    %v385 = vld [vmem:[#allocation2 + $0x68] sm:$0xff]
    %v386 = vld [vmem:[#allocation2 + $0x70] sm:$0xff]
    %v387 = vld [vmem:[#allocation2 + $0x78] sm:$0xff]
    %v388 = vld [vmem:[#allocation2 + $0x80] sm:$0xff]
    %v389 = vld [vmem:[#allocation2 + $0x88] sm:$0xff]
    %v390 = vld [vmem:[#allocation2 + $0x90] sm:$0xff]
    %v391 = vld [vmem:[#allocation2 + $0x98] sm:$0xff]
    %v392 = vld [vmem:[#allocation2 + $0xa0] sm:$0xff]
    %v393 = vld [vmem:[#allocation2 + $0xa8] sm:$0xff]
    %v394 = vld [vmem:[#allocation2 + $0xb0] sm:$0xff]
    %v395 = vld [vmem:[#allocation2 + $0xb8] sm:$0xff]
    %v396 = vld [vmem:[#allocation2 + $0xc0] sm:$0xff]
    %v397 = vld [vmem:[#allocation2 + $0xc8] sm:$0xff]
    %v398 = vld [vmem:[#allocation2 + $0xd0] sm:$0xff]
    %v399 = vld [vmem:[#allocation2 + $0xd8] sm:$0xff]
    %v400 = vld [vmem:[#allocation2 + $0xe0] sm:$0xff]
    %v401 = vld [vmem:[#allocation2 + $0xe8] sm:$0xff]
    %v402 = vld [vmem:[#allocation2 + $0xf0] sm:$0xff]
    %v403 = vld [vmem:[#allocation2 + $0xf8] sm:$0xff]
    %v404 = vld [vmem:[%s5] sm:$0x3]
    %v406 = vlaneseq
    %v407 = vshrl.u32 %v406, 7
    %v408 = vsub.s32 0, %v407
    %v409 = vrot.slane %v404, %v408
    %v410 = vlaneseq
    %v411 = vshrl.u32 %v410, 7
    %v412 = vsub.s32 1, %v411
    %v413 = vrot.slane %v404, %v412
    %v448 = vunpack.c.l.b16 %v372
    %v449 = vunpack.c.h.b16 %v372
    %v450 = vunpack.c.l.b16 %v373
    %v451 = vunpack.c.h.b16 %v373
    %v452 = vunpack.c.l.b16 %v374
    %v453 = vunpack.c.h.b16 %v374
    %v454 = vunpack.c.l.b16 %v375
    %v455 = vunpack.c.h.b16 %v375
    %v456 = vunpack.c.l.b16 %v376
    %v457 = vunpack.c.h.b16 %v376
    %v458 = vunpack.c.l.b16 %v377
    %v459 = vunpack.c.h.b16 %v377
    %v460 = vunpack.c.l.b16 %v378
    %v461 = vunpack.c.h.b16 %v378
    %v462 = vunpack.c.l.b16 %v379
    %v463 = vunpack.c.h.b16 %v379
    %v464 = vunpack.c.l.b16 %v380
    %v465 = vunpack.c.h.b16 %v380
    %v466 = vunpack.c.l.b16 %v381
    %v467 = vunpack.c.h.b16 %v381
    %v468 = vunpack.c.l.b16 %v382
    %v469 = vunpack.c.h.b16 %v382
    %v470 = vunpack.c.l.b16 %v383
    %v471 = vunpack.c.h.b16 %v383
    %v472 = vunpack.c.l.b16 %v384
    %v473 = vunpack.c.h.b16 %v384
    %v474 = vunpack.c.l.b16 %v385
    %v475 = vunpack.c.h.b16 %v385
    %v476 = vunpack.c.l.b16 %v386
    %v477 = vunpack.c.h.b16 %v386
    %v478 = vunpack.c.l.b16 %v387
    %v479 = vunpack.c.h.b16 %v387
    %v480 = vunpack.c.l.b16 %v388
    %v481 = vunpack.c.h.b16 %v388
    %v482 = vunpack.c.l.b16 %v389
    %v483 = vunpack.c.h.b16 %v389
    %v484 = vunpack.c.l.b16 %v390
    %v485 = vunpack.c.h.b16 %v390
    %v486 = vunpack.c.l.b16 %v391
    %v487 = vunpack.c.h.b16 %v391
    %v488 = vunpack.c.l.b16 %v392
    %v489 = vunpack.c.h.b16 %v392
    %v490 = vunpack.c.l.b16 %v393
    %v491 = vunpack.c.h.b16 %v393
    %v492 = vunpack.c.l.b16 %v394
    %v493 = vunpack.c.h.b16 %v394
    %v494 = vunpack.c.l.b16 %v395
    %v495 = vunpack.c.h.b16 %v395
    %v496 = vunpack.c.l.b16 %v396
    %v497 = vunpack.c.h.b16 %v396
    %v498 = vunpack.c.l.b16 %v397
    %v499 = vunpack.c.h.b16 %v397
    %v500 = vunpack.c.l.b16 %v398
    %v501 = vunpack.c.h.b16 %v398
    %v502 = vunpack.c.l.b16 %v399
    %v503 = vunpack.c.h.b16 %v399
    %v504 = vunpack.c.l.b16 %v400
    %v505 = vunpack.c.h.b16 %v400
    %v506 = vunpack.c.l.b16 %v401
    %v507 = vunpack.c.h.b16 %v401
    %v508 = vunpack.c.l.b16 %v402
    %v509 = vunpack.c.h.b16 %v402
    %v510 = vunpack.c.l.b16 %v403
    %v511 = vunpack.c.h.b16 %v403
    %v512 = vpack.c.b16 %v450, %v448
    %v513 = vpack.c.b16 %v451, %v449
    %v514 = vpack.c.b16 %v454, %v452
    %v515 = vpack.c.b16 %v455, %v453
    %v516 = vpack.c.b16 %v458, %v456
    %v517 = vpack.c.b16 %v459, %v457
    %v518 = vpack.c.b16 %v462, %v460
    %v519 = vpack.c.b16 %v463, %v461
    %v520 = vpack.c.b16 %v466, %v464
    %v521 = vpack.c.b16 %v467, %v465
    %v522 = vpack.c.b16 %v470, %v468
    %v523 = vpack.c.b16 %v471, %v469
    %v524 = vpack.c.b16 %v474, %v472
    %v525 = vpack.c.b16 %v475, %v473
    %v526 = vpack.c.b16 %v478, %v476
    %v527 = vpack.c.b16 %v479, %v477
    %v528 = vpack.c.b16 %v482, %v480
    %v529 = vpack.c.b16 %v483, %v481
    %v530 = vpack.c.b16 %v486, %v484
    %v531 = vpack.c.b16 %v487, %v485
    %v532 = vpack.c.b16 %v490, %v488
    %v533 = vpack.c.b16 %v491, %v489
    %v534 = vpack.c.b16 %v494, %v492
    %v535 = vpack.c.b16 %v495, %v493
    %v536 = vpack.c.b16 %v498, %v496
    %v537 = vpack.c.b16 %v499, %v497
    %v538 = vpack.c.b16 %v502, %v500
    %v539 = vpack.c.b16 %v503, %v501
    %v540 = vpack.c.b16 %v506, %v504
    %v541 = vpack.c.b16 %v507, %v505
    %v542 = vpack.c.b16 %v510, %v508
    %v543 = vpack.c.b16 %v511, %v509
    %576 = vmatprep.subr.bf16.mxu0 %v513
    %577 = vmatpush1.bf16.msra.mxu0 %v512
    %578 = vmatprep.subr.bf16.mxu0 %v515
    %579 = vmatpush1.bf16.msra.mxu0 %v514
    %580 = vmatprep.subr.bf16.mxu0 %v517
    %581 = vmatpush1.bf16.msra.mxu0 %v516
    %582 = vmatprep.subr.bf16.mxu0 %v519
    %583 = vmatpush1.bf16.msra.mxu0 %v518
    %584 = vmatprep.subr.bf16.mxu0 %v521
    %585 = vmatpush1.bf16.msra.mxu0 %v520
    %586 = vmatprep.subr.bf16.mxu0 %v523
    %587 = vmatpush1.bf16.msra.mxu0 %v522
    %588 = vmatprep.subr.bf16.mxu0 %v525
    %589 = vmatpush1.bf16.msra.mxu0 %v524
    %590 = vmatprep.subr.bf16.mxu0 %v527
    %591 = vmatpush1.bf16.msra.mxu0 %v526
    %592 = vmatprep.subr.bf16.mxu0 %v529
    %593 = vmatpush1.bf16.msra.mxu0 %v528
    %594 = vmatprep.subr.bf16.mxu0 %v531
    %595 = vmatpush1.bf16.msra.mxu0 %v530
    %596 = vmatprep.subr.bf16.mxu0 %v533
    %597 = vmatpush1.bf16.msra.mxu0 %v532
    %598 = vmatprep.subr.bf16.mxu0 %v535
    %599 = vmatpush1.bf16.msra.mxu0 %v534
    %600 = vmatprep.subr.bf16.mxu0 %v537
    %601 = vmatpush1.bf16.msra.mxu0 %v536
    %602 = vmatprep.subr.bf16.mxu0 %v539
    %603 = vmatpush1.bf16.msra.mxu0 %v538
    %604 = vmatprep.subr.bf16.mxu0 %v541
    %605 = vmatpush1.bf16.msra.mxu0 %v540
    %606 = vmatprep.subr.bf16.mxu0 %v543
    %607 = vmatpush1.bf16.msra.mxu0 %v542
    %608 = vmatprep.mubr.bf16.mxu0 %v371
    %609 = vmatmul.mubr.bf16.gmra.mrb[0].mxu0 %v370
    %v610 = vpop.f32.mrb[0].mxu0
    %v611 = vadd.f32 %v409, %v610
    %v612 = vpop.f32.mrb[0].mxu0
    %v613 = vadd.f32 %v413, %v612
    %v614 = vpop.f32.mrb[0].mxu0
    %v615 = vpop.f32.mrb[0].mxu0
    %616 = vdwg.mxu0
    %v617 = vmax.f32 %v611, 0.0
    %v618 = vmax.f32 %v613, 0.0
    %v619 = vpack.c.bf16 %v617, %v617
    %v620 = vpack.c.bf16 %v618, %v618
    %v621 = vld [vmem:[#allocation4] sm:$0xf]
    %v622 = vld [vmem:[#allocation4 + $0x4] sm:$0xf]
    %v623 = vld [vmem:[#allocation4 + $0x8] sm:$0xf]
    %v624 = vld [vmem:[#allocation4 + $0xc] sm:$0xf]
    %v625 = vld [vmem:[#allocation4 + $0x10] sm:$0xf]
    %v626 = vld [vmem:[#allocation4 + $0x14] sm:$0xf]
    %v627 = vld [vmem:[#allocation4 + $0x18] sm:$0xf]
    %v628 = vld [vmem:[#allocation4 + $0x1c] sm:$0xf]
    %v629 = vld [vmem:[#allocation4 + $0x20] sm:$0xf]
    %v630 = vld [vmem:[#allocation4 + $0x24] sm:$0xf]
    %v631 = vld [vmem:[#allocation4 + $0x28] sm:$0xf]
    %v632 = vld [vmem:[#allocation4 + $0x2c] sm:$0xf]
    %v633 = vld [vmem:[#allocation4 + $0x30] sm:$0xf]
    %v634 = vld [vmem:[#allocation4 + $0x34] sm:$0xf]
    %v635 = vld [vmem:[#allocation4 + $0x38] sm:$0xf]
    %v636 = vld [vmem:[#allocation4 + $0x3c] sm:$0xf]
    %v637 = vld [vmem:[#allocation4 + $0x40] sm:$0xf]
    %v638 = vld [vmem:[#allocation4 + $0x44] sm:$0xf]
    %v639 = vld [vmem:[#allocation4 + $0x48] sm:$0xf]
    %v640 = vld [vmem:[#allocation4 + $0x4c] sm:$0xf]
    %v641 = vld [vmem:[#allocation4 + $0x50] sm:$0xf]
    %v642 = vld [vmem:[#allocation4 + $0x54] sm:$0xf]
    %v643 = vld [vmem:[#allocation4 + $0x58] sm:$0xf]
    %v644 = vld [vmem:[#allocation4 + $0x5c] sm:$0xf]
    %v645 = vld [vmem:[#allocation4 + $0x60] sm:$0xf]
    %v646 = vld [vmem:[#allocation4 + $0x64] sm:$0xf]
    %v647 = vld [vmem:[#allocation4 + $0x68] sm:$0xf]
    %v648 = vld [vmem:[#allocation4 + $0x6c] sm:$0xf]
    %v649 = vld [vmem:[#allocation4 + $0x70] sm:$0xf]
    %v650 = vld [vmem:[#allocation4 + $0x74] sm:$0xf]
    %v651 = vld [vmem:[#allocation4 + $0x78] sm:$0xf]
    %v652 = vld [vmem:[#allocation4 + $0x7c] sm:$0xf]
    %v653 = vld [vmem:[%s7] sm:$0x1]
    %v655 = vlaneseq
    %v656 = vshrl.u32 %v655, 7
    %v657 = vsub.s32 0, %v656
    %v658 = vrot.slane %v653, %v657
    %v692 = vunpack.c.l.b16 %v621
    %v693 = vunpack.c.l.b16 %v622
    %v694 = vunpack.c.l.b16 %v623
    %v695 = vunpack.c.l.b16 %v624
    %v696 = vunpack.c.l.b16 %v625
    %v697 = vunpack.c.l.b16 %v626
    %v698 = vunpack.c.l.b16 %v627
    %v699 = vunpack.c.l.b16 %v628
    %v700 = vunpack.c.l.b16 %v629
    %v701 = vunpack.c.l.b16 %v630
    %v702 = vunpack.c.l.b16 %v631
    %v703 = vunpack.c.l.b16 %v632
    %v704 = vunpack.c.l.b16 %v633
    %v705 = vunpack.c.l.b16 %v634
    %v706 = vunpack.c.l.b16 %v635
    %v707 = vunpack.c.l.b16 %v636
    %v708 = vunpack.c.l.b16 %v637
    %v709 = vunpack.c.l.b16 %v638
    %v710 = vunpack.c.l.b16 %v639
    %v711 = vunpack.c.l.b16 %v640
    %v712 = vunpack.c.l.b16 %v641
    %v713 = vunpack.c.l.b16 %v642
    %v714 = vunpack.c.l.b16 %v643
    %v715 = vunpack.c.l.b16 %v644
    %v716 = vunpack.c.l.b16 %v645
    %v717 = vunpack.c.l.b16 %v646
    %v718 = vunpack.c.l.b16 %v647
    %v719 = vunpack.c.l.b16 %v648
    %v720 = vunpack.c.l.b16 %v649
    %v721 = vunpack.c.l.b16 %v650
    %v722 = vunpack.c.l.b16 %v651
    %v723 = vunpack.c.l.b16 %v652
    %v724 = vpack.c.b16 %v693, %v692
    %v725 = vpack.c.b16 %v695, %v694
    %v726 = vpack.c.b16 %v697, %v696
    %v727 = vpack.c.b16 %v699, %v698
    %v728 = vpack.c.b16 %v701, %v700
    %v729 = vpack.c.b16 %v703, %v702
    %v730 = vpack.c.b16 %v705, %v704
    %v731 = vpack.c.b16 %v707, %v706
    %v732 = vpack.c.b16 %v709, %v708
    %v733 = vpack.c.b16 %v711, %v710
    %v734 = vpack.c.b16 %v713, %v712
    %v735 = vpack.c.b16 %v715, %v714
    %v736 = vpack.c.b16 %v717, %v716
    %v737 = vpack.c.b16 %v719, %v718
    %v738 = vpack.c.b16 %v721, %v720
    %v739 = vpack.c.b16 %v723, %v722
    %756 = vmatprep.subr.bf16.mxu0 0
    %757 = vmatpush1.bf16.msra.mxu0 %v724
    %758 = vmatprep.subr.bf16.mxu0 0
    %759 = vmatpush1.bf16.msra.mxu0 %v725
    %760 = vmatprep.subr.bf16.mxu0 0
    %761 = vmatpush1.bf16.msra.mxu0 %v726
    %762 = vmatprep.subr.bf16.mxu0 0
    %763 = vmatpush1.bf16.msra.mxu0 %v727
    %764 = vmatprep.subr.bf16.mxu0 0
    %765 = vmatpush1.bf16.msra.mxu0 %v728
    %766 = vmatprep.subr.bf16.mxu0 0
    %767 = vmatpush1.bf16.msra.mxu0 %v729
    %768 = vmatprep.subr.bf16.mxu0 0
    %769 = vmatpush1.bf16.msra.mxu0 %v730
    %770 = vmatprep.subr.bf16.mxu0 0
    %771 = vmatpush1.bf16.msra.mxu0 %v731
    %772 = vmatprep.subr.bf16.mxu0 0
    %773 = vmatpush1.bf16.msra.mxu0 %v732
    %774 = vmatprep.subr.bf16.mxu0 0
    %775 = vmatpush1.bf16.msra.mxu0 %v733
    %776 = vmatprep.subr.bf16.mxu0 0
    %777 = vmatpush1.bf16.msra.mxu0 %v734
    %778 = vmatprep.subr.bf16.mxu0 0
    %779 = vmatpush1.bf16.msra.mxu0 %v735
    %780 = vmatprep.subr.bf16.mxu0 0
    %781 = vmatpush1.bf16.msra.mxu0 %v736
    %782 = vmatprep.subr.bf16.mxu0 0
    %783 = vmatpush1.bf16.msra.mxu0 %v737
    %784 = vmatprep.subr.bf16.mxu0 0
    %785 = vmatpush1.bf16.msra.mxu0 %v738
    %786 = vmatprep.subr.bf16.mxu0 0
    %787 = vmatpush1.bf16.msra.mxu0 %v739
    %788 = vmatprep.mubr.bf16.mxu0 %v620
    %789 = vmatmul.mubr.bf16.gmra.mrb[0].mxu0 %v619
    %v790 = vpop.f32.mrb[0].mxu0
    %v791 = vadd.f32 %v658, %v790
    %v792 = vpop.f32.mrb[0].mxu0
    %v793 = vpop.f32.mrb[0].mxu0
    %v794 = vpop.f32.mrb[0].mxu0
    %795 = vdwg.mxu0
    %v796 = vmax.f32 %v791, 0.0
    %v797 = vld [vmem:[#allocation6] sm:$0xff]
    %v798 = vld [vmem:[#allocation6 + $0x8] sm:$0xff]
    %v799 = vld [vmem:[#allocation6 + $0x10] sm:$0xff]
    %v800 = vld [vmem:[#allocation6 + $0x18] sm:$0xff]
    %v801 = vld [vmem:[#allocation6 + $0x20] sm:$0xff]
    %v802 = vld [vmem:[#allocation6 + $0x28] sm:$0xff]
    %v803 = vld [vmem:[#allocation6 + $0x30] sm:$0xff]
    %v804 = vld [vmem:[#allocation6 + $0x38] sm:$0xff]
    %v805 = vld [vmem:[#allocation6 + $0x40] sm:$0xff]
    %v806 = vld [vmem:[#allocation6 + $0x48] sm:$0xff]
    %v807 = vld [vmem:[#allocation6 + $0x50] sm:$0xff]
    %v808 = vld [vmem:[#allocation6 + $0x58] sm:$0xff]
    %v809 = vld [vmem:[#allocation6 + $0x60] sm:$0xff]
    %v810 = vld [vmem:[#allocation6 + $0x68] sm:$0xff]
    %v811 = vld [vmem:[#allocation6 + $0x70] sm:$0xff]
    %v812 = vld [vmem:[#allocation6 + $0x78] sm:$0xff]
    %v813 = vld [vmem:[#allocation6 + $0x80] sm:$0xff]
    %v814 = vld [vmem:[#allocation6 + $0x88] sm:$0xff]
    %v815 = vld [vmem:[#allocation6 + $0x90] sm:$0xff]
    %v816 = vld [vmem:[#allocation6 + $0x98] sm:$0xff]
    %v817 = vld [vmem:[#allocation6 + $0xa0] sm:$0xff]
    %v818 = vld [vmem:[#allocation6 + $0xa8] sm:$0xff]
    %v819 = vld [vmem:[#allocation6 + $0xb0] sm:$0xff]
    %v820 = vld [vmem:[#allocation6 + $0xb8] sm:$0xff]
    %v821 = vld [vmem:[#allocation6 + $0xc0] sm:$0xff]
    %v822 = vld [vmem:[#allocation6 + $0xc8] sm:$0xff]
    %v823 = vld [vmem:[#allocation6 + $0xd0] sm:$0xff]
    %v824 = vld [vmem:[#allocation6 + $0xd8] sm:$0xff]
    %v825 = vld [vmem:[#allocation6 + $0xe0] sm:$0xff]
    %v826 = vld [vmem:[#allocation6 + $0xe8] sm:$0xff]
    %v827 = vld [vmem:[#allocation6 + $0xf0] sm:$0xff]
    %v828 = vld [vmem:[#allocation6 + $0xf8] sm:$0xff]
    %v829 = vld [vmem:[#allocation6 + $0x100] sm:$0xff]
    %v830 = vld [vmem:[#allocation6 + $0x108] sm:$0xff]
    %v831 = vld [vmem:[#allocation6 + $0x110] sm:$0xff]
    %v832 = vld [vmem:[#allocation6 + $0x118] sm:$0xff]
    %v833 = vld [vmem:[#allocation6 + $0x120] sm:$0xff]
    %v834 = vld [vmem:[#allocation6 + $0x128] sm:$0xff]
    %v835 = vld [vmem:[#allocation6 + $0x130] sm:$0xff]
    %v836 = vld [vmem:[#allocation6 + $0x138] sm:$0xff]
    %v837 = vld [vmem:[#allocation6 + $0x140] sm:$0xff]
    %v838 = vld [vmem:[#allocation6 + $0x148] sm:$0xff]
    %v839 = vld [vmem:[#allocation6 + $0x150] sm:$0xff]
    %v840 = vld [vmem:[#allocation6 + $0x158] sm:$0xff]
    %v841 = vld [vmem:[#allocation6 + $0x160] sm:$0xff]
    %v842 = vld [vmem:[#allocation6 + $0x168] sm:$0xff]
    %v843 = vld [vmem:[#allocation6 + $0x170] sm:$0xff]
    %v844 = vld [vmem:[#allocation6 + $0x178] sm:$0xff]
    %v845 = vld [vmem:[%s9] sm:$0x7]
    %v847 = vlaneseq
    %v848 = vshrl.u32 %v847, 7
    %v849 = vsub.s32 0, %v848
    %v850 = vrot.slane %v845, %v849
    %v851 = vlaneseq
    %v852 = vshrl.u32 %v851, 7
    %v853 = vsub.s32 1, %v852
    %v854 = vrot.slane %v845, %v853
    %v855 = vlaneseq
    %v856 = vshrl.u32 %v855, 7
    %v857 = vsub.s32 2, %v856
    %v858 = vrot.slane %v845, %v857
    %862 = vmatprep.subr.mxu0 %v798
    %863 = vmatpush1.msra.mxu0 %v797
    %864 = vmatprep.subr.mxu0 %v801
    %865 = vmatpush1.msra.mxu0 %v800
    %866 = vmatprep.subr.mxu0 %v804
    %867 = vmatpush1.msra.mxu0 %v803
    %868 = vmatprep.subr.mxu0 %v807
    %869 = vmatpush1.msra.mxu0 %v806
    %870 = vmatprep.subr.mxu0 %v810
    %871 = vmatpush1.msra.mxu0 %v809
    %872 = vmatprep.subr.mxu0 %v813
    %873 = vmatpush1.msra.mxu0 %v812
    %874 = vmatprep.subr.mxu0 %v816
    %875 = vmatpush1.msra.mxu0 %v815
    %876 = vmatprep.subr.mxu0 %v819
    %877 = vmatpush1.msra.mxu0 %v818
    %878 = vmatprep.subr.mxu0 %v822
    %879 = vmatpush1.msra.mxu0 %v821
    %880 = vmatprep.subr.mxu0 %v825
    %881 = vmatpush1.msra.mxu0 %v824
    %882 = vmatprep.subr.mxu0 %v828
    %883 = vmatpush1.msra.mxu0 %v827
    %884 = vmatprep.subr.mxu0 %v831
    %885 = vmatpush1.msra.mxu0 %v830
    %886 = vmatprep.subr.mxu0 %v834
    %887 = vmatpush1.msra.mxu0 %v833
    %888 = vmatprep.subr.mxu0 %v837
    %889 = vmatpush1.msra.mxu0 %v836
    %890 = vmatprep.subr.mxu0 %v840
    %891 = vmatpush1.msra.mxu0 %v839
    %892 = vmatprep.subr.mxu0 %v843
    %893 = vmatpush1.msra.mxu0 %v842
    %894 = vmatprep.subr.mxu0 0.0
    %895 = vmatpush1.msra.mxu0 0.0
    %896 = vmatprep.subr.mxu0 0.0
    %897 = vmatpush1.msra.mxu0 0.0
    %898 = vmatprep.subr.mxu0 0.0
    %899 = vmatpush1.msra.mxu0 0.0
    %900 = vmatprep.subr.mxu0 0.0
    %901 = vmatpush1.msra.mxu0 0.0
    %902 = vmatprep.subr.mxu0 0.0
    %903 = vmatpush1.msra.mxu0 0.0
    %904 = vmatprep.subr.mxu0 0.0
    %905 = vmatpush1.msra.mxu0 0.0
    %906 = vmatprep.subr.mxu0 0.0
    %907 = vmatpush1.msra.mxu0 0.0
    %908 = vmatprep.subr.mxu0 0.0
    %909 = vmatpush1.msra.mxu0 0.0
    %910 = vmatprep.subr.mxu0 0.0
    %911 = vmatpush1.msra.mxu0 0.0
    %912 = vmatprep.subr.mxu0 0.0
    %913 = vmatpush1.msra.mxu0 0.0
    %914 = vmatprep.subr.mxu0 0.0
    %915 = vmatpush1.msra.mxu0 0.0
    %916 = vmatprep.subr.mxu0 0.0
    %917 = vmatpush1.msra.mxu0 0.0
    %918 = vmatprep.subr.mxu0 0.0
    %919 = vmatpush1.msra.mxu0 0.0
    %920 = vmatprep.subr.mxu0 0.0
    %921 = vmatpush1.msra.mxu0 0.0
    %922 = vmatprep.subr.mxu0 0.0
    %923 = vmatpush1.msra.mxu0 0.0
    %924 = vmatprep.subr.mxu0 0.0
    %925 = vmatpush1.msra.mxu0 0.0
    %926 = vmatprep.mubr.f32.mxu0 0.0
    %927 = vmatmul.mubr.f32.gmra.mrb[0].mxu0 %v796
    %v928 = vpop.f32.mrb[0].mxu0
    %v929 = vadd.f32 %v850, %v928
    %v930 = vpop.f32.mrb[0].mxu0
    %v931 = vadd.f32 %v854, %v930
    %932 = vdwg.mxu0
    %933 = vmatprep.subr.mxu0 0.0
    %934 = vmatpush1.msra.mxu0 %v799
    %935 = vmatprep.subr.mxu0 0.0
    %936 = vmatpush1.msra.mxu0 %v802
    %937 = vmatprep.subr.mxu0 0.0
    %938 = vmatpush1.msra.mxu0 %v805
    %939 = vmatprep.subr.mxu0 0.0
    %940 = vmatpush1.msra.mxu0 %v808
    %941 = vmatprep.subr.mxu0 0.0
    %942 = vmatpush1.msra.mxu0 %v811
    %943 = vmatprep.subr.mxu0 0.0
    %944 = vmatpush1.msra.mxu0 %v814
    %945 = vmatprep.subr.mxu0 0.0
    %946 = vmatpush1.msra.mxu0 %v817
    %947 = vmatprep.subr.mxu0 0.0
    %948 = vmatpush1.msra.mxu0 %v820
    %949 = vmatprep.subr.mxu0 0.0
    %950 = vmatpush1.msra.mxu0 %v823
    %951 = vmatprep.subr.mxu0 0.0
    %952 = vmatpush1.msra.mxu0 %v826
    %953 = vmatprep.subr.mxu0 0.0
    %954 = vmatpush1.msra.mxu0 %v829
    %955 = vmatprep.subr.mxu0 0.0
    %956 = vmatpush1.msra.mxu0 %v832
    %957 = vmatprep.subr.mxu0 0.0
    %958 = vmatpush1.msra.mxu0 %v835
    %959 = vmatprep.subr.mxu0 0.0
    %960 = vmatpush1.msra.mxu0 %v838
    %961 = vmatprep.subr.mxu0 0.0
    %962 = vmatpush1.msra.mxu0 %v841
    %963 = vmatprep.subr.mxu0 0.0
    %964 = vmatpush1.msra.mxu0 %v844
    %965 = vmatprep.subr.mxu0 0.0
    %966 = vmatpush1.msra.mxu0 0.0
    %967 = vmatprep.subr.mxu0 0.0
    %968 = vmatpush1.msra.mxu0 0.0
    %969 = vmatprep.subr.mxu0 0.0
    %970 = vmatpush1.msra.mxu0 0.0
    %971 = vmatprep.subr.mxu0 0.0
    %972 = vmatpush1.msra.mxu0 0.0
    %973 = vmatprep.subr.mxu0 0.0
    %974 = vmatpush1.msra.mxu0 0.0
    %975 = vmatprep.subr.mxu0 0.0
    %976 = vmatpush1.msra.mxu0 0.0
    %977 = vmatprep.subr.mxu0 0.0
    %978 = vmatpush1.msra.mxu0 0.0
    %979 = vmatprep.subr.mxu0 0.0
    %980 = vmatpush1.msra.mxu0 0.0
    %981 = vmatprep.subr.mxu0 0.0
    %982 = vmatpush1.msra.mxu0 0.0
    %983 = vmatprep.subr.mxu0 0.0
    %984 = vmatpush1.msra.mxu0 0.0
    %985 = vmatprep.subr.mxu0 0.0
    %986 = vmatpush1.msra.mxu0 0.0
    %987 = vmatprep.subr.mxu0 0.0
    %988 = vmatpush1.msra.mxu0 0.0
    %989 = vmatprep.subr.mxu0 0.0
    %990 = vmatpush1.msra.mxu0 0.0
    %991 = vmatprep.subr.mxu0 0.0
    %992 = vmatpush1.msra.mxu0 0.0
    %993 = vmatprep.subr.mxu0 0.0
    %994 = vmatpush1.msra.mxu0 0.0
    %995 = vmatprep.subr.mxu0 0.0
    %996 = vmatpush1.msra.mxu0 0.0
    %997 = vmatprep.mubr.f32.mxu0 0.0
    %998 = vmatmul.mubr.f32.gmra.mrb[0].mxu0 %v796
    %v999 = vpop.f32.mrb[0].mxu0
    %v1000 = vadd.f32 %v858, %v999
    %v1001 = vpop.f32.mrb[0].mxu0
    %1002 = vdwg.mxu0
    %v1003 = vld [vmem:[#allocation7] sm:$0xff]
    %v1004 = vld [vmem:[#allocation7 + $0x8] sm:$0xff]
    %v1005 = vld [vmem:[#allocation7 + $0x10] sm:$0xff]
    %v1006 = vld [vmem:[#allocation7 + $0x18] sm:$0xff]
    %v1007 = vld [vmem:[#allocation7 + $0x20] sm:$0xff]
    %v1008 = vld [vmem:[#allocation7 + $0x28] sm:$0xff]
    %v1009 = vld [vmem:[#allocation7 + $0x30] sm:$0xff]
    %v1010 = vld [vmem:[#allocation7 + $0x38] sm:$0xff]
    %v1011 = vld [vmem:[#allocation7 + $0x40] sm:$0xff]
    %v1012 = vld [vmem:[#allocation7 + $0x48] sm:$0xff]
    %v1013 = vld [vmem:[#allocation7 + $0x50] sm:$0xff]
    %v1014 = vld [vmem:[#allocation7 + $0x58] sm:$0xff]
    %v1015 = vld [vmem:[#allocation7 + $0x60] sm:$0xff]
    %v1016 = vld [vmem:[#allocation7 + $0x68] sm:$0xff]
    %v1017 = vld [vmem:[#allocation7 + $0x70] sm:$0xff]
    %v1018 = vld [vmem:[#allocation7 + $0x78] sm:$0xff]
    %v1019 = vld [vmem:[#allocation7 + $0x80] sm:$0xff]
    %v1020 = vld [vmem:[#allocation7 + $0x88] sm:$0xff]
    %v1021 = vld [vmem:[#allocation7 + $0x90] sm:$0xff]
    %v1022 = vld [vmem:[#allocation7 + $0x98] sm:$0xff]
    %v1023 = vld [vmem:[#allocation7 + $0xa0] sm:$0xff]
    %v1024 = vld [vmem:[#allocation7 + $0xa8] sm:$0xff]
    %v1025 = vld [vmem:[#allocation7 + $0xb0] sm:$0xff]
    %v1026 = vld [vmem:[#allocation7 + $0xb8] sm:$0xff]
    %v1027 = vld [vmem:[#allocation7 + $0xc0] sm:$0xff]
    %v1028 = vld [vmem:[#allocation7 + $0xc8] sm:$0xff]
    %v1029 = vld [vmem:[#allocation7 + $0xd0] sm:$0xff]
    %v1030 = vld [vmem:[#allocation7 + $0xd8] sm:$0xff]
    %v1031 = vld [vmem:[#allocation7 + $0xe0] sm:$0xff]
    %v1032 = vld [vmem:[#allocation7 + $0xe8] sm:$0xff]
    %v1033 = vld [vmem:[#allocation7 + $0xf0] sm:$0xff]
    %v1034 = vld [vmem:[#allocation7 + $0xf8] sm:$0xff]
    %v1035 = vld [vmem:[#allocation7 + $0x100] sm:$0xff]
    %v1036 = vld [vmem:[#allocation7 + $0x108] sm:$0xff]
    %v1037 = vld [vmem:[#allocation7 + $0x110] sm:$0xff]
    %v1038 = vld [vmem:[#allocation7 + $0x118] sm:$0xff]
    %v1039 = vld [vmem:[#allocation7 + $0x120] sm:$0xff]
    %v1040 = vld [vmem:[#allocation7 + $0x128] sm:$0xff]
    %v1041 = vld [vmem:[#allocation7 + $0x130] sm:$0xff]
    %v1042 = vld [vmem:[#allocation7 + $0x138] sm:$0xff]
    %v1043 = vld [vmem:[#allocation7 + $0x140] sm:$0xff]
    %v1044 = vld [vmem:[#allocation7 + $0x148] sm:$0xff]
    %v1045 = vld [vmem:[#allocation7 + $0x150] sm:$0xff]
    %v1046 = vld [vmem:[#allocation7 + $0x158] sm:$0xff]
    %v1047 = vld [vmem:[#allocation7 + $0x160] sm:$0xff]
    %v1048 = vld [vmem:[#allocation7 + $0x168] sm:$0xff]
    %v1049 = vld [vmem:[#allocation7 + $0x170] sm:$0xff]
    %v1050 = vld [vmem:[#allocation7 + $0x178] sm:$0xff]
    %v1051 = vld [vmem:[%s11] sm:$0x7]
    %v1053 = vlaneseq
    %v1054 = vshrl.u32 %v1053, 7
    %v1055 = vsub.s32 0, %v1054
    %v1056 = vrot.slane %v1051, %v1055
    %v1057 = vlaneseq
    %v1058 = vshrl.u32 %v1057, 7
    %v1059 = vsub.s32 1, %v1058
    %v1060 = vrot.slane %v1051, %v1059
    %v1061 = vlaneseq
    %v1062 = vshrl.u32 %v1061, 7
    %v1063 = vsub.s32 2, %v1062
    %v1064 = vrot.slane %v1051, %v1063
    %1068 = vmatprep.subr.mxu0 %v1004
    %1069 = vmatpush1.msra.mxu0 %v1003
    %1070 = vmatprep.subr.mxu0 %v1007
    %1071 = vmatpush1.msra.mxu0 %v1006
    %1072 = vmatprep.subr.mxu0 %v1010
    %1073 = vmatpush1.msra.mxu0 %v1009
    %1074 = vmatprep.subr.mxu0 %v1013
    %1075 = vmatpush1.msra.mxu0 %v1012
    %1076 = vmatprep.subr.mxu0 %v1016
    %1077 = vmatpush1.msra.mxu0 %v1015
    %1078 = vmatprep.subr.mxu0 %v1019
    %1079 = vmatpush1.msra.mxu0 %v1018
    %1080 = vmatprep.subr.mxu0 %v1022
    %1081 = vmatpush1.msra.mxu0 %v1021
    %1082 = vmatprep.subr.mxu0 %v1025
    %1083 = vmatpush1.msra.mxu0 %v1024
    %1084 = vmatprep.subr.mxu0 %v1028
    %1085 = vmatpush1.msra.mxu0 %v1027
    %1086 = vmatprep.subr.mxu0 %v1031
    %1087 = vmatpush1.msra.mxu0 %v1030
    %1088 = vmatprep.subr.mxu0 %v1034
    %1089 = vmatpush1.msra.mxu0 %v1033
    %1090 = vmatprep.subr.mxu0 %v1037
    %1091 = vmatpush1.msra.mxu0 %v1036
    %1092 = vmatprep.subr.mxu0 %v1040
    %1093 = vmatpush1.msra.mxu0 %v1039
    %1094 = vmatprep.subr.mxu0 %v1043
    %1095 = vmatpush1.msra.mxu0 %v1042
    %1096 = vmatprep.subr.mxu0 %v1046
    %1097 = vmatpush1.msra.mxu0 %v1045
    %1098 = vmatprep.subr.mxu0 %v1049
    %1099 = vmatpush1.msra.mxu0 %v1048
    %1100 = vmatprep.subr.mxu0 0.0
    %1101 = vmatpush1.msra.mxu0 0.0
    %1102 = vmatprep.subr.mxu0 0.0
    %1103 = vmatpush1.msra.mxu0 0.0
    %1104 = vmatprep.subr.mxu0 0.0
    %1105 = vmatpush1.msra.mxu0 0.0
    %1106 = vmatprep.subr.mxu0 0.0
    %1107 = vmatpush1.msra.mxu0 0.0
    %1108 = vmatprep.subr.mxu0 0.0
    %1109 = vmatpush1.msra.mxu0 0.0
    %1110 = vmatprep.subr.mxu0 0.0
    %1111 = vmatpush1.msra.mxu0 0.0
    %1112 = vmatprep.subr.mxu0 0.0
    %1113 = vmatpush1.msra.mxu0 0.0
    %1114 = vmatprep.subr.mxu0 0.0
    %1115 = vmatpush1.msra.mxu0 0.0
    %1116 = vmatprep.subr.mxu0 0.0
    %1117 = vmatpush1.msra.mxu0 0.0
    %1118 = vmatprep.subr.mxu0 0.0
    %1119 = vmatpush1.msra.mxu0 0.0
    %1120 = vmatprep.subr.mxu0 0.0
    %1121 = vmatpush1.msra.mxu0 0.0
    %1122 = vmatprep.subr.mxu0 0.0
    %1123 = vmatpush1.msra.mxu0 0.0
    %1124 = vmatprep.subr.mxu0 0.0
    %1125 = vmatpush1.msra.mxu0 0.0
    %1126 = vmatprep.subr.mxu0 0.0
    %1127 = vmatpush1.msra.mxu0 0.0
    %1128 = vmatprep.subr.mxu0 0.0
    %1129 = vmatpush1.msra.mxu0 0.0
    %1130 = vmatprep.subr.mxu0 0.0
    %1131 = vmatpush1.msra.mxu0 0.0
    %1132 = vmatprep.mubr.f32.mxu0 0.0
    %1133 = vmatmul.mubr.f32.gmra.mrb[0].mxu0 %v120
    %v1134 = vpop.f32.mrb[0].mxu0
    %v1135 = vadd.f32 %v1056, %v1134
    %v1136 = vpop.f32.mrb[0].mxu0
    %v1137 = vadd.f32 %v1060, %v1136
    %1138 = vdwg.mxu0
    %1139 = vmatprep.subr.mxu0 0.0
    %1140 = vmatpush1.msra.mxu0 %v1005
    %1141 = vmatprep.subr.mxu0 0.0
    %1142 = vmatpush1.msra.mxu0 %v1008
    %1143 = vmatprep.subr.mxu0 0.0
    %1144 = vmatpush1.msra.mxu0 %v1011
    %1145 = vmatprep.subr.mxu0 0.0
    %1146 = vmatpush1.msra.mxu0 %v1014
    %1147 = vmatprep.subr.mxu0 0.0
    %1148 = vmatpush1.msra.mxu0 %v1017
    %1149 = vmatprep.subr.mxu0 0.0
    %1150 = vmatpush1.msra.mxu0 %v1020
    %1151 = vmatprep.subr.mxu0 0.0
    %1152 = vmatpush1.msra.mxu0 %v1023
    %1153 = vmatprep.subr.mxu0 0.0
    %1154 = vmatpush1.msra.mxu0 %v1026
    %1155 = vmatprep.subr.mxu0 0.0
    %1156 = vmatpush1.msra.mxu0 %v1029
    %1157 = vmatprep.subr.mxu0 0.0
    %1158 = vmatpush1.msra.mxu0 %v1032
    %1159 = vmatprep.subr.mxu0 0.0
    %1160 = vmatpush1.msra.mxu0 %v1035
    %1161 = vmatprep.subr.mxu0 0.0
    %1162 = vmatpush1.msra.mxu0 %v1038
    %1163 = vmatprep.subr.mxu0 0.0
    %1164 = vmatpush1.msra.mxu0 %v1041
    %1165 = vmatprep.subr.mxu0 0.0
    %1166 = vmatpush1.msra.mxu0 %v1044
    %1167 = vmatprep.subr.mxu0 0.0
    %1168 = vmatpush1.msra.mxu0 %v1047
    %1169 = vmatprep.subr.mxu0 0.0
    %1170 = vmatpush1.msra.mxu0 %v1050
    %1171 = vmatprep.subr.mxu0 0.0
    %1172 = vmatpush1.msra.mxu0 0.0
    %1173 = vmatprep.subr.mxu0 0.0
    %1174 = vmatpush1.msra.mxu0 0.0
    %1175 = vmatprep.subr.mxu0 0.0
    %1176 = vmatpush1.msra.mxu0 0.0
    %1177 = vmatprep.subr.mxu0 0.0
    %1178 = vmatpush1.msra.mxu0 0.0
    %1179 = vmatprep.subr.mxu0 0.0
    %1180 = vmatpush1.msra.mxu0 0.0
    %1181 = vmatprep.subr.mxu0 0.0
    %1182 = vmatpush1.msra.mxu0 0.0
    %1183 = vmatprep.subr.mxu0 0.0
    %1184 = vmatpush1.msra.mxu0 0.0
    %1185 = vmatprep.subr.mxu0 0.0
    %1186 = vmatpush1.msra.mxu0 0.0
    %1187 = vmatprep.subr.mxu0 0.0
    %1188 = vmatpush1.msra.mxu0 0.0
    %1189 = vmatprep.subr.mxu0 0.0
    %1190 = vmatpush1.msra.mxu0 0.0
    %1191 = vmatprep.subr.mxu0 0.0
    %1192 = vmatpush1.msra.mxu0 0.0
    %1193 = vmatprep.subr.mxu0 0.0
    %1194 = vmatpush1.msra.mxu0 0.0
    %1195 = vmatprep.subr.mxu0 0.0
    %1196 = vmatpush1.msra.mxu0 0.0
    %1197 = vmatprep.subr.mxu0 0.0
    %1198 = vmatpush1.msra.mxu0 0.0
    %1199 = vmatprep.subr.mxu0 0.0
    %1200 = vmatpush1.msra.mxu0 0.0
    %1201 = vmatprep.subr.mxu0 0.0
    %1202 = vmatpush1.msra.mxu0 0.0
    %1203 = vmatprep.mubr.f32.mxu0 0.0
    %1204 = vmatmul.mubr.f32.gmra.mrb[0].mxu0 %v120
    %v1205 = vpop.f32.mrb[0].mxu0
    %v1206 = vadd.f32 %v1064, %v1205
    %v1207 = vpop.f32.mrb[0].mxu0
    %1208 = vdwg.mxu0
    %v1209 = vadd.f32 %v929, %v1135
    %v1210 = vmul.f32 %v1209, 0.5
    %v1211 = vtanh.pop %v1210
    %v1212 = vmul.f32 %v1211, 0.5
    %v1213 = vadd.f32 %v1212, 0.5
    %v1214 = vadd.f32 %v931, %v1137
    %v1215 = vmul.f32 %v1214, 0.5
    %v1216 = vtanh.pop %v1215
    %v1217 = vmul.f32 %v1216, 0.5
    %v1218 = vadd.f32 %v1217, 0.5
    %v1219 = vmul.f32 %v1213, %v1206
    %v1220 = vadd.f32 %v1000, %v1219
    %v1221 = vtanh.pop %v1220
    %v1222 = vsub.f32 1.0, %v1218
    %v1223 = vmul.f32 %v1222, %v1221
    %v1224 = vmul.f32 %v1218, %v120
    %v1225 = vadd.f32 %v1223, %v1224
    %v1226 = vld [vmem:[#allocation9] sm:$0xff]
    %v1227 = vld [vmem:[#allocation9 + $0x8] sm:$0xff]
    %v1228 = vld [vmem:[#allocation9 + $0x10] sm:$0xff]
    %v1229 = vld [vmem:[#allocation9 + $0x18] sm:$0xff]
    %v1230 = vld [vmem:[#allocation9 + $0x20] sm:$0xff]
    %v1231 = vld [vmem:[#allocation9 + $0x28] sm:$0xff]
    %v1232 = vld [vmem:[#allocation9 + $0x30] sm:$0xff]
    %v1233 = vld [vmem:[#allocation9 + $0x38] sm:$0xff]
    %v1234 = vld [vmem:[#allocation9 + $0x40] sm:$0xff]
    %v1235 = vld [vmem:[#allocation9 + $0x48] sm:$0xff]
    %v1236 = vld [vmem:[#allocation9 + $0x50] sm:$0xff]
    %v1237 = vld [vmem:[#allocation9 + $0x58] sm:$0xff]
    %v1238 = vld [vmem:[#allocation9 + $0x60] sm:$0xff]
    %v1239 = vld [vmem:[#allocation9 + $0x68] sm:$0xff]
    %v1240 = vld [vmem:[#allocation9 + $0x70] sm:$0xff]
    %v1241 = vld [vmem:[#allocation9 + $0x78] sm:$0xff]
    %v1242 = vld [vmem:[%s13] sm:$0x1]
    %v1244 = vlaneseq
    %v1245 = vshrl.u32 %v1244, 7
    %v1246 = vsub.s32 0, %v1245
    %v1247 = vrot.slane %v1242, %v1246
    %1249 = vmatprep.subr.mxu0 0.0
    %1250 = vmatpush1.msra.mxu0 %v1226
    %1251 = vmatprep.subr.mxu0 0.0
    %1252 = vmatpush1.msra.mxu0 %v1227
    %1253 = vmatprep.subr.mxu0 0.0
    %1254 = vmatpush1.msra.mxu0 %v1228
    %1255 = vmatprep.subr.mxu0 0.0
    %1256 = vmatpush1.msra.mxu0 %v1229
    %1257 = vmatprep.subr.mxu0 0.0
    %1258 = vmatpush1.msra.mxu0 %v1230
    %1259 = vmatprep.subr.mxu0 0.0
    %1260 = vmatpush1.msra.mxu0 %v1231
    %1261 = vmatprep.subr.mxu0 0.0
    %1262 = vmatpush1.msra.mxu0 %v1232
    %1263 = vmatprep.subr.mxu0 0.0
    %1264 = vmatpush1.msra.mxu0 %v1233
    %1265 = vmatprep.subr.mxu0 0.0
    %1266 = vmatpush1.msra.mxu0 %v1234
    %1267 = vmatprep.subr.mxu0 0.0
    %1268 = vmatpush1.msra.mxu0 %v1235
    %1269 = vmatprep.subr.mxu0 0.0
    %1270 = vmatpush1.msra.mxu0 %v1236
    %1271 = vmatprep.subr.mxu0 0.0
    %1272 = vmatpush1.msra.mxu0 %v1237
    %1273 = vmatprep.subr.mxu0 0.0
    %1274 = vmatpush1.msra.mxu0 %v1238
    %1275 = vmatprep.subr.mxu0 0.0
    %1276 = vmatpush1.msra.mxu0 %v1239
    %1277 = vmatprep.subr.mxu0 0.0
    %1278 = vmatpush1.msra.mxu0 %v1240
    %1279 = vmatprep.subr.mxu0 0.0
    %1280 = vmatpush1.msra.mxu0 %v1241
    %1281 = vmatprep.subr.mxu0 0.0
    %1282 = vmatpush1.msra.mxu0 0.0
    %1283 = vmatprep.subr.mxu0 0.0
    %1284 = vmatpush1.msra.mxu0 0.0
    %1285 = vmatprep.subr.mxu0 0.0
    %1286 = vmatpush1.msra.mxu0 0.0
    %1287 = vmatprep.subr.mxu0 0.0
    %1288 = vmatpush1.msra.mxu0 0.0
    %1289 = vmatprep.subr.mxu0 0.0
    %1290 = vmatpush1.msra.mxu0 0.0
    %1291 = vmatprep.subr.mxu0 0.0
    %1292 = vmatpush1.msra.mxu0 0.0
    %1293 = vmatprep.subr.mxu0 0.0
    %1294 = vmatpush1.msra.mxu0 0.0
    %1295 = vmatprep.subr.mxu0 0.0
    %1296 = vmatpush1.msra.mxu0 0.0
    %1297 = vmatprep.subr.mxu0 0.0
    %1298 = vmatpush1.msra.mxu0 0.0
    %1299 = vmatprep.subr.mxu0 0.0
    %1300 = vmatpush1.msra.mxu0 0.0
    %1301 = vmatprep.subr.mxu0 0.0
    %1302 = vmatpush1.msra.mxu0 0.0
    %1303 = vmatprep.subr.mxu0 0.0
    %1304 = vmatpush1.msra.mxu0 0.0
    %1305 = vmatprep.subr.mxu0 0.0
    %1306 = vmatpush1.msra.mxu0 0.0
    %1307 = vmatprep.subr.mxu0 0.0
    %1308 = vmatpush1.msra.mxu0 0.0
    %1309 = vmatprep.subr.mxu0 0.0
    %1310 = vmatpush1.msra.mxu0 0.0
    %1311 = vmatprep.subr.mxu0 0.0
    %1312 = vmatpush1.msra.mxu0 0.0
    %1313 = vmatprep.mubr.f32.mxu0 0.0
    %1314 = vmatmul.mubr.f32.gmra.mrb[0].mxu0 %v1225
    %v1315 = vpop.f32.mrb[0].mxu0
    %v1316 = vadd.f32 %v1247, %v1315
    %v1317 = vpop.f32.mrb[0].mxu0
    %1318 = vdwg.mxu0
    %1319 = vst [vmem:[%s14] sm:$0xff] %v1316
    %1320 = vst [vmem:[%s15] sm:$0xff] %v1225
    // Predicated region
    $region78: #{rnn_agent_forward.1} parent=1 // pred_check
      _
    $region79: #{rnn_agent_forward.1} parent=1 // pred_check_branch
      %1322 = sbr.rel (0) target = $region81
    $region80: #{rnn_agent_forward.1} parent=1 // pred_region
      _
    $region81: #{rnn_agent_forward.1} parent=1 // pred_fallthru
      _
    // Predicated region
    $region82: #{rnn_agent_forward.1} parent=1 // pred_check
      _
    $region83: #{rnn_agent_forward.1} parent=1 // pred_check_branch
      %1324 = sbr.rel (0) target = $region85
    $region84: #{rnn_agent_forward.1} parent=1 // pred_region
      _
    $region85: #{rnn_agent_forward.1} parent=1 // pred_fallthru
      _
    // Predicated region
    $region86: #{rnn_agent_forward.1} parent=1 // pred_check
      _
    $region87: #{rnn_agent_forward.1} parent=1 // pred_check_branch
      %1326 = sbr.rel (0) target = $region89
    $region88: #{rnn_agent_forward.1} parent=1 // pred_region
      _
    $region89: #{rnn_agent_forward.1} parent=1 // pred_fallthru
      _
    // Predicated region
    $region90: #{rnn_agent_forward.1} parent=1 // pred_check
      _
    $region91: #{rnn_agent_forward.1} parent=1 // pred_check_branch
      %1328 = sbr.rel (0) target = $region93
    $region92: #{rnn_agent_forward.1} parent=1 // pred_region
      _
    $region93: #{rnn_agent_forward.1} parent=1 // pred_fallthru
      _
    %1329 = vsyncpa [#allocation3], 1
    %1330 = vsyncpa [#allocation5], 1
    %1331 = vsyncpa [#allocation8], 1

</llo_original>
